<compile_context>
chip_gen: v7x
topology: tpu7x:2x2x1
jax: 0.10.0
libtpu: 0.0.40
codegen_flags: <defaults>
</compile_context>

<pallas_src>
import functools

import jax
import jax.numpy as jnp
import numpy as np
from jax.experimental import pallas as pl
from jax.experimental.pallas import tpu as pltpu

NEG_SLOPE = 0.125


def _leaky(x):
    return jnp.where(x > 0, x, NEG_SLOPE * x)


def _round_up(v, m):
    return (v + m - 1) // m * m


def _unet_up_kernel(x_ref, skip_ref, maskp_ref, mask4_ref, wd_ref, bup_ref,
                    w1_ref, b1_ref, w2_ref, b2_ref, o_ref,
                    up_scr, h1_scr, col1, col2,
                    *, Cup, Cs, F, Lc, Lcp, ML, Wp):
    """One batch element: deconv -> concat -> conv1+lrelu -> conv2+lrelu.

    All activations live on the low-resolution grid as 4 sub-pixel phase
    planes, stored flattened with a zero halo: plane column (ML + r*Wp + q)
    holds padded position (r, q); halo/margin columns are zero so 3x3 taps
    become plain shifted windows with no boundary masks.
    """
    Ccat = Cup + Cs
    f32 = jnp.float32
    bf16 = jnp.bfloat16

    validp = maskp_ref[...] > 0.0          # (1, Lcp)   image-interior mask
    valid4 = mask4_ref[...] > 0.0          # (1, 4*Lcp) same, tiled per phase

    # Margins / halos of the plane scratches must read as zero padding.
    up_scr[...] = jnp.zeros_like(up_scr)
    h1_scr[...] = jnp.zeros_like(h1_scr)

    # ---- ConvTranspose2d(2x2, stride 2): one fused MXU matmul covering all
    # 4 output sub-pixel phases (rows = phase-major x Cup).  f32 accumulate.
    up = jnp.dot(wd_ref[...], x_ref[0], preferred_element_type=f32)   # (4Cup, Lcp)
    up = jnp.where(validp, up + bup_ref[...], 0.0)                    # zero halo
    for ph in range(4):
        up_scr[ph, :, ML:ML + Lc] = up[ph * Cup:(ph + 1) * Cup, :Lc]

    # ---- 3x3 tap -> (input phase plane, flat window start) mapping.
    # Output phase (a, b), tap (dp, dq): full-res row 2i+a+dp = 2(i+ro)+pa.
    taps = []
    t = 0
    for dp in (-1, 0, 1):
        for dq in (-1, 0, 1):
            for ph in range(4):
                a, b = ph // 2, ph % 2
                u, v = a + dp, b + dq
                pidx = 2 * (u % 2) + (v % 2)
                st = ML + (u // 2) * Wp + (v // 2)
                taps.append((t, ph, pidx, st))
            t += 1

    win_cache = {}

    def window(planes, key, pidx, st):
        # Trace-time CSE: the same shifted window is reused by several taps.
        k = (key, pidx, st)
        if k not in win_cache:
            win_cache[k] = planes[pidx][:, st:st + Lc]
        return win_cache[k]

    # ---- conv1 (3x3, pad 1) + LeakyReLU with the up/skip concat folded in:
    # fill the (9*Ccat, 4*Lcp) im2col block, then ONE bf16 matmul.
    up_planes = [up_scr[p] for p in range(4)]                      # (Cup, Wm) f32
    sk_planes = [skip_ref[0, p].astype(f32) for p in range(4)]     # (Cs, Wm)  f32
    for t, ph, pidx, st in taps:
        cb = ph * Lcp
        col1[t * Ccat:t * Ccat + Cup, cb:cb + Lc] = window(up_planes, "u", pidx, st)
        col1[t * Ccat + Cup:(t + 1) * Ccat, cb:cb + Lc] = window(sk_planes, "s", pidx, st)
    r1 = jnp.dot(w1_ref[...], col1[...].astype(bf16), preferred_element_type=f32)
    h1 = jnp.where(valid4, _leaky(r1 + b1_ref[...]), 0.0)          # (F, 4*Lcp) f32
    for ph in range(4):
        h1_scr[ph, :, ML:ML + Lc] = h1[:, ph * Lcp:ph * Lcp + Lc]

    # ---- conv2 (3x3, pad 1) + LeakyReLU: same im2col + single matmul.
    h1_planes = [h1_scr[p] for p in range(4)]                      # (F, Wm) f32
    for t, ph, pidx, st in taps:
        cb = ph * Lcp
        col2[t * F:(t + 1) * F, cb:cb + Lc] = window(h1_planes, "h", pidx, st)
    r2 = jnp.dot(w2_ref[...], col2[...].astype(bf16), preferred_element_type=f32)
    o_ref[0] = jnp.where(valid4, _leaky(r2 + b2_ref[...]), 0.0).astype(o_ref.dtype)


def unet_up_forward(params, inputs0, *skips):
    """unetUp.forward (is_deconv=True): up(inputs0) -> cat(up, skips) -> unetConv2."""
    N, Cin, H, W = inputs0.shape
    wup, bup = params["up_w"], params["up_b"]
    w1, b1 = params["conv1_w"], params["conv1_b"]
    w2, b2 = params["conv2_w"], params["conv2_b"]
    Cup = wup.shape[1]
    F = w1.shape[0]
    H2, W2 = 2 * H, 2 * W
    Hp, Wp = H + 2, W + 2                       # low-res grid + zero halo
    Lc = Hp * Wp                                # flattened padded plane length
    M0 = Wp + 1                                 # max |flat shift| of a 3x3 tap
    ML = _round_up(M0, 128)                     # lane-aligned left margin
    Wm = _round_up(ML + Lc + M0, 128)           # stored plane width
    Lcp = _round_up(Lc, 128)                    # per-phase output segment width

    skip = skips[0] if len(skips) == 1 else jnp.concatenate(skips, axis=1)
    Cs = skip.shape[1]
    Ccat = Cup + Cs
    assert skip.shape == (N, Cs, H2, W2), skip.shape
    assert w1.shape == (F, Ccat, 3, 3), (w1.shape, Cup, Cs)
    assert w2.shape == (F, F, 3, 3), w2.shape

    cdt = jnp.bfloat16   # MXU operand dtype (accumulation stays f32)

    # ---- inputs: pad to the flattened zero-halo layout (cheap XLA, one pass).
    x_c = jnp.pad(inputs0, ((0, 0), (0, 0), (1, 1), (1, 1))).reshape(N, Cin, Lc)
    x_c = jnp.pad(x_c, ((0, 0), (0, 0), (0, Lcp - Lc))).astype(cdt)

    # skip: de-interleave the 2x2 sub-pixel phases, zero-halo pad, flatten,
    # and add margins so the kernel can take shifted windows with plain slices.
    s_ph = skip.reshape(N, Cs, H, 2, W, 2).transpose(0, 3, 5, 1, 2, 4)
    s_ph = s_ph.reshape(N, 4, Cs, H, W)
    s_ph = jnp.pad(s_ph, ((0, 0), (0, 0), (0, 0), (1, 1), (1, 1))).reshape(N, 4, Cs, Lc)
    skip_m = jnp.pad(s_ph, ((0, 0), (0, 0), (0, 0), (ML, Wm - ML - Lc))).astype(cdt)

    # ---- tiny one-off weight re-layouts.
    # deconv (Cin, Cup, 2, 2) -> (4*Cup, Cin): rows phase-major (2a+b), Cup-minor.
    wd = jnp.transpose(wup, (2, 3, 1, 0)).reshape(4 * Cup, Cin).astype(cdt)
    bup_c = jnp.tile(bup, 4).reshape(4 * Cup, 1).astype(jnp.float32)
    # conv weights (F, C, 3, 3) -> (F, 9*C): columns tap-major, channel-minor.
    w1s = jnp.transpose(w1, (0, 2, 3, 1)).reshape(F, 9 * Ccat).astype(cdt)
    w2s = jnp.transpose(w2, (0, 2, 3, 1)).reshape(F, 9 * F).astype(cdt)
    b1c = b1.reshape(F, 1).astype(jnp.float32)
    b2c = b2.reshape(F, 1).astype(jnp.float32)

    # ---- image-interior masks over the flattened padded plane (host-side).
    idx = np.arange(Lcp)
    rr, qq = idx // Wp, idx % Wp
    validp = (idx < Lc) & (rr >= 1) & (rr <= H) & (qq >= 1) & (qq <= W)
    maskp = jnp.asarray(validp.reshape(1, Lcp), jnp.float32)
    mask4 = jnp.asarray(np.tile(validp, 4).reshape(1, 4 * Lcp), jnp.float32)

    kernel = functools.partial(_unet_up_kernel, Cup=Cup, Cs=Cs, F=F,
                               Lc=Lc, Lcp=Lcp, ML=ML, Wp=Wp)

    def const(shape):
        return pl.BlockSpec(shape, lambda n, _s=shape: (0,) * len(_s))

    # Generation-aware VMEM budget (v5e/v6e: 128 MiB physical, v7x: 64 MiB).
    try:
        vmem_limit = min(100 * 1024 * 1024,
                         (int(pltpu.get_tpu_info().vmem_capacity_bytes) * 3) // 4)
    except Exception:
        vmem_limit = 48 * 1024 * 1024

    out = pl.pallas_call(
        kernel,
        out_shape=jax.ShapeDtypeStruct((N, F, 4 * Lcp), jnp.float32),
        grid_spec=pltpu.PrefetchScalarGridSpec(
            num_scalar_prefetch=0,
            grid=(N,),
            in_specs=[
                pl.BlockSpec((1, Cin, Lcp), lambda n: (n, 0, 0)),
                pl.BlockSpec((1, 4, Cs, Wm), lambda n: (n, 0, 0, 0)),
                const((1, Lcp)),
                const((1, 4 * Lcp)),
                const((4 * Cup, Cin)),
                const((4 * Cup, 1)),
                const((F, 9 * Ccat)),
                const((F, 1)),
                const((F, 9 * F)),
                const((F, 1)),
            ],
            out_specs=pl.BlockSpec((1, F, 4 * Lcp), lambda n: (n, 0, 0)),
            scratch_shapes=[
                pltpu.VMEM((4, Cup, Wm), jnp.float32),          # deconv phase planes
                pltpu.VMEM((4, F, Wm), jnp.float32),            # conv1 output planes
                pltpu.VMEM((9 * Ccat, 4 * Lcp), jnp.float32),   # conv1 im2col
                pltpu.VMEM((9 * F, 4 * Lcp), jnp.float32),      # conv2 im2col
            ],
        ),
        compiler_params=pltpu.CompilerParams(
            dimension_semantics=("parallel",),
            vmem_limit_bytes=int(vmem_limit),
        ),
    )(x_c, skip_m, maskp, mask4, wd, bup_c, w1s, b1c, w2s, b2c)

    # (N, F, 4*Lcp) -> (N, F, 2H, 2W): drop lane padding / halo, re-interleave
    # the 4 sub-pixel phases (free metadata ops + one XLA transpose).
    o = out.reshape(N, F, 2, 2, Lcp)[..., :Lc].reshape(N, F, 2, 2, Hp, Wp)
    o = o[..., 1:H + 1, 1:W + 1]
    o = o.transpose(0, 1, 4, 2, 5, 3).reshape(N, F, H2, W2)
    return o.astype(inputs0.dtype)


def _reference(params, inputs0, *skips):
    """Pure-JAX f32 reference mirroring the PyTorch module (NCHW)."""
    w, b = params["up_w"], params["up_b"]
    N, Cin, H, W = inputs0.shape
    Cout = w.shape[1]
    x = jnp.transpose(inputs0, (0, 2, 3, 1))                    # NHWC
    y = jnp.einsum("nhwc,cfij->nhwfij", x, w,
                   precision=jax.lax.Precision.HIGHEST)
    y = y + b[None, None, None, :, None, None]
    up = jnp.transpose(y, (0, 3, 1, 4, 2, 5)).reshape(N, Cout, 2 * H, 2 * W)
    cat = jnp.concatenate([up, *skips], axis=1)

    def conv3(xn, wc, bc):
        o = jax.lax.conv_general_dilated(
            xn, wc, (1, 1), ((1, 1), (1, 1)),
            dimension_numbers=("NCHW", "OIHW", "NCHW"),
            precision=jax.lax.Precision.HIGHEST)
        o = o + bc[None, :, None, None]
        return jnp.where(o > 0, o, NEG_SLOPE * o)

    h = conv3(cat, params["conv1_w"], params["conv1_b"])
    return conv3(h, params["conv2_w"], params["conv2_b"])


if __name__ == "__main__":
    key = jax.random.PRNGKey(0)
    ks = jax.random.split(key, 8)

    # unetUp(in_size=8, out_size=4, is_deconv=True)
    in_size, out_size = 8, 4
    N, H, W = 2, 8, 8  # inputs0 spatial; skip connection is 2x larger

    inputs0 = jax.random.normal(ks[0], (N, in_size, H, W), jnp.float32)
    skip = jax.random.normal(ks[1], (N, out_size, 2 * H, 2 * W), jnp.float32)

    params = dict(
        # ConvTranspose2d(in_size, out_size, kernel_size=(2,2), stride=(2,2))
        up_w=0.1 * jax.random.normal(ks[2], (in_size, out_size, 2, 2), jnp.float32),
        up_b=0.1 * jax.random.normal(ks[3], (out_size,), jnp.float32),
        # unetConv2(out_size*2, out_size, is_batchnorm=False)
        conv1_w=0.1 * jax.random.normal(ks[4], (out_size, out_size * 2, 3, 3), jnp.float32),
        conv1_b=0.1 * jax.random.normal(ks[5], (out_size,), jnp.float32),
        conv2_w=0.1 * jax.random.normal(ks[6], (out_size, out_size, 3, 3), jnp.float32),
        conv2_b=0.1 * jax.random.normal(ks[7], (out_size,), jnp.float32),
    )

    out = jax.jit(unet_up_forward)(params, inputs0, skip)
    out = jax.block_until_ready(out)
    assert out.shape == (N, out_size, 2 * H, 2 * W), out.shape
    assert out.dtype == jnp.float32

    ref = jax.block_until_ready(_reference(params, inputs0, skip))
    err = float(jnp.max(jnp.abs(out - ref)))
    # bf16 MXU operands with f32 accumulation -> looser tolerance than pure f32.
    assert err < 5e-2, f"max abs err {err}"
    print("KERNEL_OK")
</pallas_src>

<mosaic_0001>
module attributes {stable_mosaic.version = 11 : i64} {
  func.func @_unet_up_kernel(%arg0: i32, %arg1: memref<1x8x128xbf16, #tpu.memory_space<vmem>>, %arg2: memref<1x4x4x256xbf16, #tpu.memory_space<vmem>>, %arg3: memref<1x128xf32, #tpu.memory_space<vmem>>, %arg4: memref<1x512xf32, #tpu.memory_space<vmem>>, %arg5: memref<16x8xbf16, #tpu.memory_space<vmem>>, %arg6: memref<16x1xf32, #tpu.memory_space<vmem>>, %arg7: memref<4x72xbf16, #tpu.memory_space<vmem>>, %arg8: memref<4x1xf32, #tpu.memory_space<vmem>>, %arg9: memref<4x36xbf16, #tpu.memory_space<vmem>>, %arg10: memref<4x1xf32, #tpu.memory_space<vmem>>, %arg11: memref<1x4x512xf32, #tpu.memory_space<vmem>>, %arg12: memref<4x4x256xf32, #tpu.memory_space<vmem>>, %arg13: memref<4x4x256xf32, #tpu.memory_space<vmem>>, %arg14: memref<72x512xf32, #tpu.memory_space<vmem>>, %arg15: memref<36x512xf32, #tpu.memory_space<vmem>>) attributes {dimension_semantics = [#tpu.dimension_semantics<parallel>], iteration_bounds = array<i64: 2>, scalar_prefetch = 0 : i64, scratch_operands = 4 : i64, tpu.core_type = #tpu.core_type<tc>, window_params = [{transform_indices = @transform_0, window_bounds = array<i64: 1, 8, 128>}, {transform_indices = @transform_1, window_bounds = array<i64: 1, 4, 4, 256>}, {pipeline_mode = #tpu.pipeline_mode<synchronous>, transform_indices = @transform_2, window_bounds = array<i64: 1, 128>}, {pipeline_mode = #tpu.pipeline_mode<synchronous>, transform_indices = @transform_3, window_bounds = array<i64: 1, 512>}, {pipeline_mode = #tpu.pipeline_mode<synchronous>, transform_indices = @transform_4, window_bounds = array<i64: 16, 8>}, {pipeline_mode = #tpu.pipeline_mode<synchronous>, transform_indices = @transform_5, window_bounds = array<i64: 16, 1>}, {pipeline_mode = #tpu.pipeline_mode<synchronous>, transform_indices = @transform_6, window_bounds = array<i64: 4, 72>}, {pipeline_mode = #tpu.pipeline_mode<synchronous>, transform_indices = @transform_7, window_bounds = array<i64: 4, 1>}, {pipeline_mode = #tpu.pipeline_mode<synchronous>, transform_indices = @transform_8, window_bounds = array<i64: 4, 36>}, {pipeline_mode = #tpu.pipeline_mode<synchronous>, transform_indices = @transform_9, window_bounds = array<i64: 4, 1>}, {transform_indices = @transform_10, window_bounds = array<i64: 1, 4, 512>}]} {
    %c0 = arith.constant 0 : index
    %c0_0 = arith.constant 0 : index
    %0 = vector.load %arg3[%c0, %c0_0] : memref<1x128xf32, #tpu.memory_space<vmem>>, vector<1x128xf32>
    %cst = arith.constant 0.000000e+00 : f32
    %1 = vector.broadcast %cst : f32 to vector<1x128xf32>
    %2 = arith.cmpf ogt, %0, %1 : vector<1x128xf32>
    %c0_1 = arith.constant 0 : index
    %c0_2 = arith.constant 0 : index
    %3 = vector.load %arg4[%c0_1, %c0_2] : memref<1x512xf32, #tpu.memory_space<vmem>>, vector<1x512xf32>
    %cst_3 = arith.constant 0.000000e+00 : f32
    %4 = vector.broadcast %cst_3 : f32 to vector<1x512xf32>
    %5 = arith.cmpf ogt, %3, %4 : vector<1x512xf32>
    %cst_4 = arith.constant 0.000000e+00 : f32
    %6 = vector.broadcast %cst_4 : f32 to vector<4x4x256xf32>
    %c0_5 = arith.constant 0 : index
    %c0_6 = arith.constant 0 : index
    %c0_7 = arith.constant 0 : index
    %7 = vector.load %arg12[%c0_5, %c0_6, %c0_7] : memref<4x4x256xf32, #tpu.memory_space<vmem>>, vector<4x4x256xf32>
    tpu.vector_store %arg12[%c0_5, %c0_6, %c0_7], %6 {strides = array<i32>} : memref<4x4x256xf32, #tpu.memory_space<vmem>>, vector<4x4x256xf32>,
    %cst_8 = arith.constant 0.000000e+00 : f32
    %8 = vector.broadcast %cst_8 : f32 to vector<4x4x256xf32>
    %c0_9 = arith.constant 0 : index
    %c0_10 = arith.constant 0 : index
    %c0_11 = arith.constant 0 : index
    %9 = vector.load %arg13[%c0_9, %c0_10, %c0_11] : memref<4x4x256xf32, #tpu.memory_space<vmem>>, vector<4x4x256xf32>
    tpu.vector_store %arg13[%c0_9, %c0_10, %c0_11], %8 {strides = array<i32>} : memref<4x4x256xf32, #tpu.memory_space<vmem>>, vector<4x4x256xf32>,
    %c0_12 = arith.constant 0 : index
    %c0_13 = arith.constant 0 : index
    %10 = vector.load %arg5[%c0_12, %c0_13] : memref<16x8xbf16, #tpu.memory_space<vmem>>, vector<16x8xbf16>
    %c0_14 = arith.constant 0 : index
    %c0_15 = arith.constant 0 : index
    %c0_16 = arith.constant 0 : index
    %11 = vector.load %arg1[%c0_14, %c0_15, %c0_16] : memref<1x8x128xbf16, #tpu.memory_space<vmem>>, vector<1x8x128xbf16>
    %12 = vector.shape_cast %11 : vector<1x8x128xbf16> to vector<8x128xbf16>
    %cst_17 = arith.constant dense<0.000000e+00> : vector<16x128xf32>
    %13 = tpu.matmul %10, %12, %cst_17 {dimension_numbers = #tpu.dot_dimension_numbers<[1], [0], [0], [1], [0, 0, 1, 1], [], []>} : vector<16x8xbf16>, vector<8x128xbf16>, vector<16x128xf32> -> vector<16x128xf32>
    %c0_18 = arith.constant 0 : index
    %c0_19 = arith.constant 0 : index
    %14 = vector.load %arg6[%c0_18, %c0_19] : memref<16x1xf32, #tpu.memory_space<vmem>>, vector<16x1xf32>
    %15 = vector.broadcast %14 : vector<16x1xf32> to vector<16x128xf32>
    %16 = arith.addf %13, %15 : vector<16x128xf32>
    %cst_20 = arith.constant 0.000000e+00 : f32
    %17 = vector.shape_cast %2 : vector<1x128xi1> to vector<1x128xi1>
    %18 = vector.broadcast %17 : vector<1x128xi1> to vector<16x128xi1>
    %19 = vector.broadcast %cst_20 : f32 to vector<16x128xf32>
    %20 = arith.select %18, %16, %19 : vector<16x128xi1>, vector<16x128xf32>
    %21 = vector.extract_strided_slice %20 {offsets = [0, 0], sizes = [4, 100], strides = [1, 1]} : vector<16x128xf32> to vector<4x100xf32>
    %c0_21 = arith.constant 0 : index
    %c0_22 = arith.constant 0 : index
    %c128 = arith.constant 128 : index
    %22 = vector.load %arg12[%c0_21, %c0_22, %c128] : memref<4x4x256xf32, #tpu.memory_space<vmem>>, vector<1x4x100xf32>
    %23 = vector.shape_cast %22 : vector<1x4x100xf32> to vector<4x100xf32>
    %24 = vector.shape_cast %21 : vector<4x100xf32> to vector<1x4x100xf32>
    tpu.vector_store %arg12[%c0_21, %c0_22, %c128], %24 {strides = array<i32>} : memref<4x4x256xf32, #tpu.memory_space<vmem>>, vector<1x4x100xf32>,
    %25 = vector.extract_strided_slice %20 {offsets = [4, 0], sizes = [4, 100], strides = [1, 1]} : vector<16x128xf32> to vector<4x100xf32>
    %c1 = arith.constant 1 : index
    %c0_23 = arith.constant 0 : index
    %c128_24 = arith.constant 128 : index
    %26 = vector.load %arg12[%c1, %c0_23, %c128_24] : memref<4x4x256xf32, #tpu.memory_space<vmem>>, vector<1x4x100xf32>
    %27 = vector.shape_cast %26 : vector<1x4x100xf32> to vector<4x100xf32>
    %28 = vector.shape_cast %25 : vector<4x100xf32> to vector<1x4x100xf32>
    tpu.vector_store %arg12[%c1, %c0_23, %c128_24], %28 {strides = array<i32>} : memref<4x4x256xf32, #tpu.memory_space<vmem>>, vector<1x4x100xf32>,
    %29 = vector.extract_strided_slice %20 {offsets = [8, 0], sizes = [4, 100], strides = [1, 1]} : vector<16x128xf32> to vector<4x100xf32>
    %c2 = arith.constant 2 : index
    %c0_25 = arith.constant 0 : index
    %c128_26 = arith.constant 128 : index
    %30 = vector.load %arg12[%c2, %c0_25, %c128_26] : memref<4x4x256xf32, #tpu.memory_space<vmem>>, vector<1x4x100xf32>
    %31 = vector.shape_cast %30 : vector<1x4x100xf32> to vector<4x100xf32>
    %32 = vector.shape_cast %29 : vector<4x100xf32> to vector<1x4x100xf32>
    tpu.vector_store %arg12[%c2, %c0_25, %c128_26], %32 {strides = array<i32>} : memref<4x4x256xf32, #tpu.memory_space<vmem>>, vector<1x4x100xf32>,
    %33 = vector.extract_strided_slice %20 {offsets = [12, 0], sizes = [4, 100], strides = [1, 1]} : vector<16x128xf32> to vector<4x100xf32>
    %c3 = arith.constant 3 : index
    %c0_27 = arith.constant 0 : index
    %c128_28 = arith.constant 128 : index
    %34 = vector.load %arg12[%c3, %c0_27, %c128_28] : memref<4x4x256xf32, #tpu.memory_space<vmem>>, vector<1x4x100xf32>
    %35 = vector.shape_cast %34 : vector<1x4x100xf32> to vector<4x100xf32>
    %36 = vector.shape_cast %33 : vector<4x100xf32> to vector<1x4x100xf32>
    tpu.vector_store %arg12[%c3, %c0_27, %c128_28], %36 {strides = array<i32>} : memref<4x4x256xf32, #tpu.memory_space<vmem>>, vector<1x4x100xf32>,
    %c0_29 = arith.constant 0 : index
    %c0_30 = arith.constant 0 : index
    %c0_31 = arith.constant 0 : index
    %37 = vector.load %arg12[%c0_29, %c0_30, %c0_31] : memref<4x4x256xf32, #tpu.memory_space<vmem>>, vector<1x4x256xf32>
    %38 = vector.shape_cast %37 : vector<1x4x256xf32> to vector<4x256xf32>
    %c1_32 = arith.constant 1 : index
    %c0_33 = arith.constant 0 : index
    %c0_34 = arith.constant 0 : index
    %39 = vector.load %arg12[%c1_32, %c0_33, %c0_34] : memref<4x4x256xf32, #tpu.memory_space<vmem>>, vector<1x4x256xf32>
    %40 = vector.shape_cast %39 : vector<1x4x256xf32> to vector<4x256xf32>
    %c2_35 = arith.constant 2 : index
    %c0_36 = arith.constant 0 : index
    %c0_37 = arith.constant 0 : index
    %41 = vector.load %arg12[%c2_35, %c0_36, %c0_37] : memref<4x4x256xf32, #tpu.memory_space<vmem>>, vector<1x4x256xf32>
    %42 = vector.shape_cast %41 : vector<1x4x256xf32> to vector<4x256xf32>
    %c3_38 = arith.constant 3 : index
    %c0_39 = arith.constant 0 : index
    %c0_40 = arith.constant 0 : index
    %43 = vector.load %arg12[%c3_38, %c0_39, %c0_40] : memref<4x4x256xf32, #tpu.memory_space<vmem>>, vector<1x4x256xf32>
    %44 = vector.shape_cast %43 : vector<1x4x256xf32> to vector<4x256xf32>
    %c0_41 = arith.constant 0 : index
    %c0_42 = arith.constant 0 : index
    %c0_43 = arith.constant 0 : index
    %c0_44 = arith.constant 0 : index
    %45 = vector.load %arg2[%c0_41, %c0_42, %c0_43, %c0_44] : memref<1x4x4x256xbf16, #tpu.memory_space<vmem>>, vector<1x1x4x256xbf16>
    %46 = vector.shape_cast %45 : vector<1x1x4x256xbf16> to vector<4x256xbf16>
    %47 = arith.extf %46 : vector<4x256xbf16> to vector<4x256xf32>
    %c0_45 = arith.constant 0 : index
    %c1_46 = arith.constant 1 : index
    %c0_47 = arith.constant 0 : index
    %c0_48 = arith.constant 0 : index
    %48 = vector.load %arg2[%c0_45, %c1_46, %c0_47, %c0_48] : memref<1x4x4x256xbf16, #tpu.memory_space<vmem>>, vector<1x1x4x256xbf16>
    %49 = vector.shape_cast %48 : vector<1x1x4x256xbf16> to vector<4x256xbf16>
    %50 = arith.extf %49 : vector<4x256xbf16> to vector<4x256xf32>
    %c0_49 = arith.constant 0 : index
    %c2_50 = arith.constant 2 : index
    %c0_51 = arith.constant 0 : index
    %c0_52 = arith.constant 0 : index
    %51 = vector.load %arg2[%c0_49, %c2_50, %c0_51, %c0_52] : memref<1x4x4x256xbf16, #tpu.memory_space<vmem>>, vector<1x1x4x256xbf16>
    %52 = vector.shape_cast %51 : vector<1x1x4x256xbf16> to vector<4x256xbf16>
    %53 = arith.extf %52 : vector<4x256xbf16> to vector<4x256xf32>
    %c0_53 = arith.constant 0 : index
    %c3_54 = arith.constant 3 : index
    %c0_55 = arith.constant 0 : index
    %c0_56 = arith.constant 0 : index
    %54 = vector.load %arg2[%c0_53, %c3_54, %c0_55, %c0_56] : memref<1x4x4x256xbf16, #tpu.memory_space<vmem>>, vector<1x1x4x256xbf16>
    %55 = vector.shape_cast %54 : vector<1x1x4x256xbf16> to vector<4x256xbf16>
    %56 = arith.extf %55 : vector<4x256xbf16> to vector<4x256xf32>
    %57 = vector.extract_strided_slice %44 {offsets = [0, 117], sizes = [4, 100], strides = [1, 1]} : vector<4x256xf32> to vector<4x100xf32>
    %c0_57 = arith.constant 0 : index
    %c0_58 = arith.constant 0 : index
    %58 = vector.load %arg14[%c0_57, %c0_58] : memref<72x512xf32, #tpu.memory_space<vmem>>, vector<4x100xf32>
    tpu.vector_store %arg14[%c0_57, %c0_58], %57 {strides = array<i32>} : memref<72x512xf32, #tpu.memory_space<vmem>>, vector<4x100xf32>,
    %59 = vector.extract_strided_slice %56 {offsets = [0, 117], sizes = [4, 100], strides = [1, 1]} : vector<4x256xf32> to vector<4x100xf32>
    %c4 = arith.constant 4 : index
    %c0_59 = arith.constant 0 : index
    %60 = vector.load %arg14[%c4, %c0_59] : memref<72x512xf32, #tpu.memory_space<vmem>>, vector<4x100xf32>
    tpu.vector_store %arg14[%c4, %c0_59], %59 {strides = array<i32>} : memref<72x512xf32, #tpu.memory_space<vmem>>, vector<4x100xf32>,
    %61 = vector.extract_strided_slice %42 {offsets = [0, 118], sizes = [4, 100], strides = [1, 1]} : vector<4x256xf32> to vector<4x100xf32>
    %c0_60 = arith.constant 0 : index
    %c128_61 = arith.constant 128 : index
    %62 = vector.load %arg14[%c0_60, %c128_61] : memref<72x512xf32, #tpu.memory_space<vmem>>, vector<4x100xf32>
    tpu.vector_store %arg14[%c0_60, %c128_61], %61 {strides = array<i32>} : memref<72x512xf32, #tpu.memory_space<vmem>>, vector<4x100xf32>,
    %63 = vector.extract_strided_slice %53 {offsets = [0, 118], sizes = [4, 100], strides = [1, 1]} : vector<4x256xf32> to vector<4x100xf32>
    %c4_62 = arith.constant 4 : index
    %c128_63 = arith.constant 128 : index
    %64 = vector.load %arg14[%c4_62, %c128_63] : memref<72x512xf32, #tpu.memory_space<vmem>>, vector<4x100xf32>
    tpu.vector_store %arg14[%c4_62, %c128_63], %63 {strides = array<i32>} : memref<72x512xf32, #tpu.memory_space<vmem>>, vector<4x100xf32>,
    %65 = vector.extract_strided_slice %40 {offsets = [0, 127], sizes = [4, 100], strides = [1, 1]} : vector<4x256xf32> to vector<4x100xf32>
    %c0_64 = arith.constant 0 : index
    %c256 = arith.constant 256 : index
    %66 = vector.load %arg14[%c0_64, %c256] : memref<72x512xf32, #tpu.memory_space<vmem>>, vector<4x100xf32>
    tpu.vector_store %arg14[%c0_64, %c256], %65 {strides = array<i32>} : memref<72x512xf32, #tpu.memory_space<vmem>>, vector<4x100xf32>,
    %67 = vector.extract_strided_slice %50 {offsets = [0, 127], sizes = [4, 100], strides = [1, 1]} : vector<4x256xf32> to vector<4x100xf32>
    %c4_65 = arith.constant 4 : index
    %c256_66 = arith.constant 256 : index
    %68 = vector.load %arg14[%c4_65, %c256_66] : memref<72x512xf32, #tpu.memory_space<vmem>>, vector<4x100xf32>
    tpu.vector_store %arg14[%c4_65, %c256_66], %67 {strides = array<i32>} : memref<72x512xf32, #tpu.memory_space<vmem>>, vector<4x100xf32>,
    %69 = vector.extract_strided_slice %38 {offsets = [0, 128], sizes = [4, 100], strides = [1, 1]} : vector<4x256xf32> to vector<4x100xf32>
    %c0_67 = arith.constant 0 : index
    %c384 = arith.constant 384 : index
    %70 = vector.load %arg14[%c0_67, %c384] : memref<72x512xf32, #tpu.memory_space<vmem>>, vector<4x100xf32>
    tpu.vector_store %arg14[%c0_67, %c384], %69 {strides = array<i32>} : memref<72x512xf32, #tpu.memory_space<vmem>>, vector<4x100xf32>,
    %71 = vector.extract_strided_slice %47 {offsets = [0, 128], sizes = [4, 100], strides = [1, 1]} : vector<4x256xf32> to vector<4x100xf32>
    %c4_68 = arith.constant 4 : index
    %c384_69 = arith.constant 384 : index
    %72 = vector.load %arg14[%c4_68, %c384_69] : memref<72x512xf32, #tpu.memory_space<vmem>>, vector<4x100xf32>
    tpu.vector_store %arg14[%c4_68, %c384_69], %71 {strides = array<i32>} : memref<72x512xf32, #tpu.memory_space<vmem>>, vector<4x100xf32>,
    %c8 = arith.constant 8 : index
    %c0_70 = arith.constant 0 : index
    %73 = vector.load %arg14[%c8, %c0_70] : memref<72x512xf32, #tpu.memory_space<vmem>>, vector<4x100xf32>
    tpu.vector_store %arg14[%c8, %c0_70], %61 {strides = array<i32>} : memref<72x512xf32, #tpu.memory_space<vmem>>, vector<4x100xf32>,
    %c12 = arith.constant 12 : index
    %c0_71 = arith.constant 0 : index
    %74 = vector.load %arg14[%c12, %c0_71] : memref<72x512xf32, #tpu.memory_space<vmem>>, vector<4x100xf32>
    tpu.vector_store %arg14[%c12, %c0_71], %63 {strides = array<i32>} : memref<72x512xf32, #tpu.memory_space<vmem>>, vector<4x100xf32>,
    %75 = vector.extract_strided_slice %44 {offsets = [0, 118], sizes = [4, 100], strides = [1, 1]} : vector<4x256xf32> to vector<4x100xf32>
    %c8_72 = arith.constant 8 : index
    %c128_73 = arith.constant 128 : index
    %76 = vector.load %arg14[%c8_72, %c128_73] : memref<72x512xf32, #tpu.memory_space<vmem>>, vector<4x100xf32>
    tpu.vector_store %arg14[%c8_72, %c128_73], %75 {strides = array<i32>} : memref<72x512xf32, #tpu.memory_space<vmem>>, vector<4x100xf32>,
    %77 = vector.extract_strided_slice %56 {offsets = [0, 118], sizes = [4, 100], strides = [1, 1]} : vector<4x256xf32> to vector<4x100xf32>
    %c12_74 = arith.constant 12 : index
    %c128_75 = arith.constant 128 : index
    %78 = vector.load %arg14[%c12_74, %c128_75] : memref<72x512xf32, #tpu.memory_space<vmem>>, vector<4x100xf32>
    tpu.vector_store %arg14[%c12_74, %c128_75], %77 {strides = array<i32>} : memref<72x512xf32, #tpu.memory_space<vmem>>, vector<4x100xf32>,
    %c8_76 = arith.constant 8 : index
    %c256_77 = arith.constant 256 : index
    %79 = vector.load %arg14[%c8_76, %c256_77] : memref<72x512xf32, #tpu.memory_space<vmem>>, vector<4x100xf32>
    tpu.vector_store %arg14[%c8_76, %c256_77], %69 {strides = array<i32>} : memref<72x512xf32, #tpu.memory_space<vmem>>, vector<4x100xf32>,
    %c12_78 = arith.constant 12 : index
    %c256_79 = arith.constant 256 : index
    %80 = vector.load %arg14[%c12_78, %c256_79] : memref<72x512xf32, #tpu.memory_space<vmem>>, vector<4x100xf32>
    tpu.vector_store %arg14[%c12_78, %c256_79], %71 {strides = array<i32>} : memref<72x512xf32, #tpu.memory_space<vmem>>, vector<4x100xf32>,
    %81 = vector.extract_strided_slice %40 {offsets = [0, 128], sizes = [4, 100], strides = [1, 1]} : vector<4x256xf32> to vector<4x100xf32>
    %c8_80 = arith.constant 8 : index
    %c384_81 = arith.constant 384 : index
    %82 = vector.load %arg14[%c8_80, %c384_81] : memref<72x512xf32, #tpu.memory_space<vmem>>, vector<4x100xf32>
    tpu.vector_store %arg14[%c8_80, %c384_81], %81 {strides = array<i32>} : memref<72x512xf32, #tpu.memory_space<vmem>>, vector<4x100xf32>,
    %83 = vector.extract_strided_slice %50 {offsets = [0, 128], sizes = [4, 100], strides = [1, 1]} : vector<4x256xf32> to vector<4x100xf32>
    %c12_82 = arith.constant 12 : index
    %c384_83 = arith.constant 384 : index
    %84 = vector.load %arg14[%c12_82, %c384_83] : memref<72x512xf32, #tpu.memory_space<vmem>>, vector<4x100xf32>
    tpu.vector_store %arg14[%c12_82, %c384_83], %83 {strides = array<i32>} : memref<72x512xf32, #tpu.memory_space<vmem>>, vector<4x100xf32>,
    %c16 = arith.constant 16 : index
    %c0_84 = arith.constant 0 : index
    %85 = vector.load %arg14[%c16, %c0_84] : memref<72x512xf32, #tpu.memory_space<vmem>>, vector<4x100xf32>
    tpu.vector_store %arg14[%c16, %c0_84], %75 {strides = array<i32>} : memref<72x512xf32, #tpu.memory_space<vmem>>, vector<4x100xf32>,
    %c20 = arith.constant 20 : index
    %c0_85 = arith.constant 0 : index
    %86 = vector.load %arg14[%c20, %c0_85] : memref<72x512xf32, #tpu.memory_space<vmem>>, vector<4x100xf32>
    tpu.vector_store %arg14[%c20, %c0_85], %77 {strides = array<i32>} : memref<72x512xf32, #tpu.memory_space<vmem>>, vector<4x100xf32>,
    %87 = vector.extract_strided_slice %42 {offsets = [0, 119], sizes = [4, 100], strides = [1, 1]} : vector<4x256xf32> to vector<4x100xf32>
    %c16_86 = arith.constant 16 : index
    %c128_87 = arith.constant 128 : index
    %88 = vector.load %arg14[%c16_86, %c128_87] : memref<72x512xf32, #tpu.memory_space<vmem>>, vector<4x100xf32>
    tpu.vector_store %arg14[%c16_86, %c128_87], %87 {strides = array<i32>} : memref<72x512xf32, #tpu.memory_space<vmem>>, vector<4x100xf32>,
    %89 = vector.extract_strided_slice %53 {offsets = [0, 119], sizes = [4, 100], strides = [1, 1]} : vector<4x256xf32> to vector<4x100xf32>
    %c20_88 = arith.constant 20 : index
    %c128_89 = arith.constant 128 : index
    %90 = vector.load %arg14[%c20_88, %c128_89] : memref<72x512xf32, #tpu.memory_space<vmem>>, vector<4x100xf32>
    tpu.vector_store %arg14[%c20_88, %c128_89], %89 {strides = array<i32>} : memref<72x512xf32, #tpu.memory_space<vmem>>, vector<4x100xf32>,
    %c16_90 = arith.constant 16 : index
    %c256_91 = arith.constant 256 : index
    %91 = vector.load %arg14[%c16_90, %c256_91] : memref<72x512xf32, #tpu.memory_space<vmem>>, vector<4x100xf32>
    tpu.vector_store %arg14[%c16_90, %c256_91], %81 {strides = array<i32>} : memref<72x512xf32, #tpu.memory_space<vmem>>, vector<4x100xf32>,
    %c20_92 = arith.constant 20 : index
    %c256_93 = arith.constant 256 : index
    %92 = vector.load %arg14[%c20_92, %c256_93] : memref<72x512xf32, #tpu.memory_space<vmem>>, vector<4x100xf32>
    tpu.vector_store %arg14[%c20_92, %c256_93], %83 {strides = array<i32>} : memref<72x512xf32, #tpu.memory_space<vmem>>, vector<4x100xf32>,
    %93 = vector.extract_strided_slice %38 {offsets = [0, 129], sizes = [4, 100], strides = [1, 1]} : vector<4x256xf32> to vector<4x100xf32>
    %c16_94 = arith.constant 16 : index
    %c384_95 = arith.constant 384 : index
    %94 = vector.load %arg14[%c16_94, %c384_95] : memref<72x512xf32, #tpu.memory_space<vmem>>, vector<4x100xf32>
    tpu.vector_store %arg14[%c16_94, %c384_95], %93 {strides = array<i32>} : memref<72x512xf32, #tpu.memory_space<vmem>>, vector<4x100xf32>,
    %95 = vector.extract_strided_slice %47 {offsets = [0, 129], sizes = [4, 100], strides = [1, 1]} : vector<4x256xf32> to vector<4x100xf32>
    %c20_96 = arith.constant 20 : index
    %c384_97 = arith.constant 384 : index
    %96 = vector.load %arg14[%c20_96, %c384_97] : memref<72x512xf32, #tpu.memory_space<vmem>>, vector<4x100xf32>
    tpu.vector_store %arg14[%c20_96, %c384_97], %95 {strides = array<i32>} : memref<72x512xf32, #tpu.memory_space<vmem>>, vector<4x100xf32>,
    %c24 = arith.constant 24 : index
    %c0_98 = arith.constant 0 : index
    %97 = vector.load %arg14[%c24, %c0_98] : memref<72x512xf32, #tpu.memory_space<vmem>>, vector<4x100xf32>
    tpu.vector_store %arg14[%c24, %c0_98], %65 {strides = array<i32>} : memref<72x512xf32, #tpu.memory_space<vmem>>, vector<4x100xf32>,
    %c28 = arith.constant 28 : index
    %c0_99 = arith.constant 0 : index
    %98 = vector.load %arg14[%c28, %c0_99] : memref<72x512xf32, #tpu.memory_space<vmem>>, vector<4x100xf32>
    tpu.vector_store %arg14[%c28, %c0_99], %67 {strides = array<i32>} : memref<72x512xf32, #tpu.memory_space<vmem>>, vector<4x100xf32>,
    %c24_100 = arith.constant 24 : index
    %c128_101 = arith.constant 128 : index
    %99 = vector.load %arg14[%c24_100, %c128_101] : memref<72x512xf32, #tpu.memory_space<vmem>>, vector<4x100xf32>
    tpu.vector_store %arg14[%c24_100, %c128_101], %69 {strides = array<i32>} : memref<72x512xf32, #tpu.memory_space<vmem>>, vector<4x100xf32>,
    %c28_102 = arith.constant 28 : index
    %c128_103 = arith.constant 128 : index
    %100 = vector.load %arg14[%c28_102, %c128_103] : memref<72x512xf32, #tpu.memory_space<vmem>>, vector<4x100xf32>
    tpu.vector_store %arg14[%c28_102, %c128_103], %71 {strides = array<i32>} : memref<72x512xf32, #tpu.memory_space<vmem>>, vector<4x100xf32>,
    %101 = vector.extract_strided_slice %44 {offsets = [0, 127], sizes = [4, 100], strides = [1, 1]} : vector<4x256xf32> to vector<4x100xf32>
    %c24_104 = arith.constant 24 : index
    %c256_105 = arith.constant 256 : index
    %102 = vector.load %arg14[%c24_104, %c256_105] : memref<72x512xf32, #tpu.memory_space<vmem>>, vector<4x100xf32>
    tpu.vector_store %arg14[%c24_104, %c256_105], %101 {strides = array<i32>} : memref<72x512xf32, #tpu.memory_space<vmem>>, vector<4x100xf32>,
    %103 = vector.extract_strided_slice %56 {offsets = [0, 127], sizes = [4, 100], strides = [1, 1]} : vector<4x256xf32> to vector<4x100xf32>
    %c28_106 = arith.constant 28 : index
    %c256_107 = arith.constant 256 : index
    %104 = vector.load %arg14[%c28_106, %c256_107] : memref<72x512xf32, #tpu.memory_space<vmem>>, vector<4x100xf32>
    tpu.vector_store %arg14[%c28_106, %c256_107], %103 {strides = array<i32>} : memref<72x512xf32, #tpu.memory_space<vmem>>, vector<4x100xf32>,
    %105 = vector.extract_strided_slice %42 {offsets = [0, 128], sizes = [4, 100], strides = [1, 1]} : vector<4x256xf32> to vector<4x100xf32>
    %c24_108 = arith.constant 24 : index
    %c384_109 = arith.constant 384 : index
    %106 = vector.load %arg14[%c24_108, %c384_109] : memref<72x512xf32, #tpu.memory_space<vmem>>, vector<4x100xf32>
    tpu.vector_store %arg14[%c24_108, %c384_109], %105 {strides = array<i32>} : memref<72x512xf32, #tpu.memory_space<vmem>>, vector<4x100xf32>,
    %107 = vector.extract_strided_slice %53 {offsets = [0, 128], sizes = [4, 100], strides = [1, 1]} : vector<4x256xf32> to vector<4x100xf32>
    %c28_110 = arith.constant 28 : index
    %c384_111 = arith.constant 384 : index
    %108 = vector.load %arg14[%c28_110, %c384_111] : memref<72x512xf32, #tpu.memory_space<vmem>>, vector<4x100xf32>
    tpu.vector_store %arg14[%c28_110, %c384_111], %107 {strides = array<i32>} : memref<72x512xf32, #tpu.memory_space<vmem>>, vector<4x100xf32>,
    %c32 = arith.constant 32 : index
    %c0_112 = arith.constant 0 : index
    %109 = vector.load %arg14[%c32, %c0_112] : memref<72x512xf32, #tpu.memory_space<vmem>>, vector<4x100xf32>
    tpu.vector_store %arg14[%c32, %c0_112], %69 {strides = array<i32>} : memref<72x512xf32, #tpu.memory_space<vmem>>, vector<4x100xf32>,
    %c36 = arith.constant 36 : index
    %c0_113 = arith.constant 0 : index
    %110 = vector.load %arg14[%c36, %c0_113] : memref<72x512xf32, #tpu.memory_space<vmem>>, vector<4x100xf32>
    tpu.vector_store %arg14[%c36, %c0_113], %71 {strides = array<i32>} : memref<72x512xf32, #tpu.memory_space<vmem>>, vector<4x100xf32>,
    %c32_114 = arith.constant 32 : index
    %c128_115 = arith.constant 128 : index
    %111 = vector.load %arg14[%c32_114, %c128_115] : memref<72x512xf32, #tpu.memory_space<vmem>>, vector<4x100xf32>
    tpu.vector_store %arg14[%c32_114, %c128_115], %81 {strides = array<i32>} : memref<72x512xf32, #tpu.memory_space<vmem>>, vector<4x100xf32>,
    %c36_116 = arith.constant 36 : index
    %c128_117 = arith.constant 128 : index
    %112 = vector.load %arg14[%c36_116, %c128_117] : memref<72x512xf32, #tpu.memory_space<vmem>>, vector<4x100xf32>
    tpu.vector_store %arg14[%c36_116, %c128_117], %83 {strides = array<i32>} : memref<72x512xf32, #tpu.memory_space<vmem>>, vector<4x100xf32>,
    %c32_118 = arith.constant 32 : index
    %c256_119 = arith.constant 256 : index
    %113 = vector.load %arg14[%c32_118, %c256_119] : memref<72x512xf32, #tpu.memory_space<vmem>>, vector<4x100xf32>
    tpu.vector_store %arg14[%c32_118, %c256_119], %105 {strides = array<i32>} : memref<72x512xf32, #tpu.memory_space<vmem>>, vector<4x100xf32>,
    %c36_120 = arith.constant 36 : index
    %c256_121 = arith.constant 256 : index
    %114 = vector.load %arg14[%c36_120, %c256_121] : memref<72x512xf32, #tpu.memory_space<vmem>>, vector<4x100xf32>
    tpu.vector_store %arg14[%c36_120, %c256_121], %107 {strides = array<i32>} : memref<72x512xf32, #tpu.memory_space<vmem>>, vector<4x100xf32>,
    %115 = vector.extract_strided_slice %44 {offsets = [0, 128], sizes = [4, 100], strides = [1, 1]} : vector<4x256xf32> to vector<4x100xf32>
    %c32_122 = arith.constant 32 : index
    %c384_123 = arith.constant 384 : index
    %116 = vector.load %arg14[%c32_122, %c384_123] : memref<72x512xf32, #tpu.memory_space<vmem>>, vector<4x100xf32>
    tpu.vector_store %arg14[%c32_122, %c384_123], %115 {strides = array<i32>} : memref<72x512xf32, #tpu.memory_space<vmem>>, vector<4x100xf32>,
    %117 = vector.extract_strided_slice %56 {offsets = [0, 128], sizes = [4, 100], strides = [1, 1]} : vector<4x256xf32> to vector<4x100xf32>
    %c36_124 = arith.constant 36 : index
    %c384_125 = arith.constant 384 : index
    %118 = vector.load %arg14[%c36_124, %c384_125] : memref<72x512xf32, #tpu.memory_space<vmem>>, vector<4x100xf32>
    tpu.vector_store %arg14[%c36_124, %c384_125], %117 {strides = array<i32>} : memref<72x512xf32, #tpu.memory_space<vmem>>, vector<4x100xf32>,
    %c40 = arith.constant 40 : index
    %c0_126 = arith.constant 0 : index
    %119 = vector.load %arg14[%c40, %c0_126] : memref<72x512xf32, #tpu.memory_space<vmem>>, vector<4x100xf32>
    tpu.vector_store %arg14[%c40, %c0_126], %81 {strides = array<i32>} : memref<72x512xf32, #tpu.memory_space<vmem>>, vector<4x100xf32>,
    %c44 = arith.constant 44 : index
    %c0_127 = arith.constant 0 : index
    %120 = vector.load %arg14[%c44, %c0_127] : memref<72x512xf32, #tpu.memory_space<vmem>>, vector<4x100xf32>
    tpu.vector_store %arg14[%c44, %c0_127], %83 {strides = array<i32>} : memref<72x512xf32, #tpu.memory_space<vmem>>, vector<4x100xf32>,
    %c40_128 = arith.constant 40 : index
    %c128_129 = arith.constant 128 : index
    %121 = vector.load %arg14[%c40_128, %c128_129] : memref<72x512xf32, #tpu.memory_space<vmem>>, vector<4x100xf32>
    tpu.vector_store %arg14[%c40_128, %c128_129], %93 {strides = array<i32>} : memref<72x512xf32, #tpu.memory_space<vmem>>, vector<4x100xf32>,
    %c44_130 = arith.constant 44 : index
    %c128_131 = arith.constant 128 : index
    %122 = vector.load %arg14[%c44_130, %c128_131] : memref<72x512xf32, #tpu.memory_space<vmem>>, vector<4x100xf32>
    tpu.vector_store %arg14[%c44_130, %c128_131], %95 {strides = array<i32>} : memref<72x512xf32, #tpu.memory_space<vmem>>, vector<4x100xf32>,
    %c40_132 = arith.constant 40 : index
    %c256_133 = arith.constant 256 : index
    %123 = vector.load %arg14[%c40_132, %c256_133] : memref<72x512xf32, #tpu.memory_space<vmem>>, vector<4x100xf32>
    tpu.vector_store %arg14[%c40_132, %c256_133], %115 {strides = array<i32>} : memref<72x512xf32, #tpu.memory_space<vmem>>, vector<4x100xf32>,
    %c44_134 = arith.constant 44 : index
    %c256_135 = arith.constant 256 : index
    %124 = vector.load %arg14[%c44_134, %c256_135] : memref<72x512xf32, #tpu.memory_space<vmem>>, vector<4x100xf32>
    tpu.vector_store %arg14[%c44_134, %c256_135], %117 {strides = array<i32>} : memref<72x512xf32, #tpu.memory_space<vmem>>, vector<4x100xf32>,
    %125 = vector.extract_strided_slice %42 {offsets = [0, 129], sizes = [4, 100], strides = [1, 1]} : vector<4x256xf32> to vector<4x100xf32>
    %c40_136 = arith.constant 40 : index
    %c384_137 = arith.constant 384 : index
    %126 = vector.load %arg14[%c40_136, %c384_137] : memref<72x512xf32, #tpu.memory_space<vmem>>, vector<4x100xf32>
    tpu.vector_store %arg14[%c40_136, %c384_137], %125 {strides = array<i32>} : memref<72x512xf32, #tpu.memory_space<vmem>>, vector<4x100xf32>,
    %127 = vector.extract_strided_slice %53 {offsets = [0, 129], sizes = [4, 100], strides = [1, 1]} : vector<4x256xf32> to vector<4x100xf32>
    %c44_138 = arith.constant 44 : index
    %c384_139 = arith.constant 384 : index
    %128 = vector.load %arg14[%c44_138, %c384_139] : memref<72x512xf32, #tpu.memory_space<vmem>>, vector<4x100xf32>
    tpu.vector_store %arg14[%c44_138, %c384_139], %127 {strides = array<i32>} : memref<72x512xf32, #tpu.memory_space<vmem>>, vector<4x100xf32>,
    %c48 = arith.constant 48 : index
    %c0_140 = arith.constant 0 : index
    %129 = vector.load %arg14[%c48, %c0_140] : memref<72x512xf32, #tpu.memory_space<vmem>>, vector<4x100xf32>
    tpu.vector_store %arg14[%c48, %c0_140], %101 {strides = array<i32>} : memref<72x512xf32, #tpu.memory_space<vmem>>, vector<4x100xf32>,
    %c52 = arith.constant 52 : index
    %c0_141 = arith.constant 0 : index
    %130 = vector.load %arg14[%c52, %c0_141] : memref<72x512xf32, #tpu.memory_space<vmem>>, vector<4x100xf32>
    tpu.vector_store %arg14[%c52, %c0_141], %103 {strides = array<i32>} : memref<72x512xf32, #tpu.memory_space<vmem>>, vector<4x100xf32>,
    %c48_142 = arith.constant 48 : index
    %c128_143 = arith.constant 128 : index
    %131 = vector.load %arg14[%c48_142, %c128_143] : memref<72x512xf32, #tpu.memory_space<vmem>>, vector<4x100xf32>
    tpu.vector_store %arg14[%c48_142, %c128_143], %105 {strides = array<i32>} : memref<72x512xf32, #tpu.memory_space<vmem>>, vector<4x100xf32>,
    %c52_144 = arith.constant 52 : index
    %c128_145 = arith.constant 128 : index
    %132 = vector.load %arg14[%c52_144, %c128_145] : memref<72x512xf32, #tpu.memory_space<vmem>>, vector<4x100xf32>
    tpu.vector_store %arg14[%c52_144, %c128_145], %107 {strides = array<i32>} : memref<72x512xf32, #tpu.memory_space<vmem>>, vector<4x100xf32>,
    %133 = vector.extract_strided_slice %40 {offsets = [0, 137], sizes = [4, 100], strides = [1, 1]} : vector<4x256xf32> to vector<4x100xf32>
    %c48_146 = arith.constant 48 : index
    %c256_147 = arith.constant 256 : index
    %134 = vector.load %arg14[%c48_146, %c256_147] : memref<72x512xf32, #tpu.memory_space<vmem>>, vector<4x100xf32>
    tpu.vector_store %arg14[%c48_146, %c256_147], %133 {strides = array<i32>} : memref<72x512xf32, #tpu.memory_space<vmem>>, vector<4x100xf32>,
    %135 = vector.extract_strided_slice %50 {offsets = [0, 137], sizes = [4, 100], strides = [1, 1]} : vector<4x256xf32> to vector<4x100xf32>
    %c52_148 = arith.constant 52 : index
    %c256_149 = arith.constant 256 : index
    %136 = vector.load %arg14[%c52_148, %c256_149] : memref<72x512xf32, #tpu.memory_space<vmem>>, vector<4x100xf32>
    tpu.vector_store %arg14[%c52_148, %c256_149], %135 {strides = array<i32>} : memref<72x512xf32, #tpu.memory_space<vmem>>, vector<4x100xf32>,
    %137 = vector.extract_strided_slice %38 {offsets = [0, 138], sizes = [4, 100], strides = [1, 1]} : vector<4x256xf32> to vector<4x100xf32>
    %c48_150 = arith.constant 48 : index
    %c384_151 = arith.constant 384 : index
    %138 = vector.load %arg14[%c48_150, %c384_151] : memref<72x512xf32, #tpu.memory_space<vmem>>, vector<4x100xf32>
    tpu.vector_store %arg14[%c48_150, %c384_151], %137 {strides = array<i32>} : memref<72x512xf32, #tpu.memory_space<vmem>>, vector<4x100xf32>,
    %139 = vector.extract_strided_slice %47 {offsets = [0, 138], sizes = [4, 100], strides = [1, 1]} : vector<4x256xf32> to vector<4x100xf32>
    %c52_152 = arith.constant 52 : index
    %c384_153 = arith.constant 384 : index
    %140 = vector.load %arg14[%c52_152, %c384_153] : memref<72x512xf32, #tpu.memory_space<vmem>>, vector<4x100xf32>
    tpu.vector_store %arg14[%c52_152, %c384_153], %139 {strides = array<i32>} : memref<72x512xf32, #tpu.memory_space<vmem>>, vector<4x100xf32>,
    %c56 = arith.constant 56 : index
    %c0_154 = arith.constant 0 : index
    %141 = vector.load %arg14[%c56, %c0_154] : memref<72x512xf32, #tpu.memory_space<vmem>>, vector<4x100xf32>
    tpu.vector_store %arg14[%c56, %c0_154], %105 {strides = array<i32>} : memref<72x512xf32, #tpu.memory_space<vmem>>, vector<4x100xf32>,
    %c60 = arith.constant 60 : index
    %c0_155 = arith.constant 0 : index
    %142 = vector.load %arg14[%c60, %c0_155] : memref<72x512xf32, #tpu.memory_space<vmem>>, vector<4x100xf32>
    tpu.vector_store %arg14[%c60, %c0_155], %107 {strides = array<i32>} : memref<72x512xf32, #tpu.memory_space<vmem>>, vector<4x100xf32>,
    %c56_156 = arith.constant 56 : index
    %c128_157 = arith.constant 128 : index
    %143 = vector.load %arg14[%c56_156, %c128_157] : memref<72x512xf32, #tpu.memory_space<vmem>>, vector<4x100xf32>
    tpu.vector_store %arg14[%c56_156, %c128_157], %115 {strides = array<i32>} : memref<72x512xf32, #tpu.memory_space<vmem>>, vector<4x100xf32>,
    %c60_158 = arith.constant 60 : index
    %c128_159 = arith.constant 128 : index
    %144 = vector.load %arg14[%c60_158, %c128_159] : memref<72x512xf32, #tpu.memory_space<vmem>>, vector<4x100xf32>
    tpu.vector_store %arg14[%c60_158, %c128_159], %117 {strides = array<i32>} : memref<72x512xf32, #tpu.memory_space<vmem>>, vector<4x100xf32>,
    %c56_160 = arith.constant 56 : index
    %c256_161 = arith.constant 256 : index
    %145 = vector.load %arg14[%c56_160, %c256_161] : memref<72x512xf32, #tpu.memory_space<vmem>>, vector<4x100xf32>
    tpu.vector_store %arg14[%c56_160, %c256_161], %137 {strides = array<i32>} : memref<72x512xf32, #tpu.memory_space<vmem>>, vector<4x100xf32>,
    %c60_162 = arith.constant 60 : index
    %c256_163 = arith.constant 256 : index
    %146 = vector.load %arg14[%c60_162, %c256_163] : memref<72x512xf32, #tpu.memory_space<vmem>>, vector<4x100xf32>
    tpu.vector_store %arg14[%c60_162, %c256_163], %139 {strides = array<i32>} : memref<72x512xf32, #tpu.memory_space<vmem>>, vector<4x100xf32>,
    %147 = vector.extract_strided_slice %40 {offsets = [0, 138], sizes = [4, 100], strides = [1, 1]} : vector<4x256xf32> to vector<4x100xf32>
    %c56_164 = arith.constant 56 : index
    %c384_165 = arith.constant 384 : index
    %148 = vector.load %arg14[%c56_164, %c384_165] : memref<72x512xf32, #tpu.memory_space<vmem>>, vector<4x100xf32>
    tpu.vector_store %arg14[%c56_164, %c384_165], %147 {strides = array<i32>} : memref<72x512xf32, #tpu.memory_space<vmem>>, vector<4x100xf32>,
    %149 = vector.extract_strided_slice %50 {offsets = [0, 138], sizes = [4, 100], strides = [1, 1]} : vector<4x256xf32> to vector<4x100xf32>
    %c60_166 = arith.constant 60 : index
    %c384_167 = arith.constant 384 : index
    %150 = vector.load %arg14[%c60_166, %c384_167] : memref<72x512xf32, #tpu.memory_space<vmem>>, vector<4x100xf32>
    tpu.vector_store %arg14[%c60_166, %c384_167], %149 {strides = array<i32>} : memref<72x512xf32, #tpu.memory_space<vmem>>, vector<4x100xf32>,
    %c64 = arith.constant 64 : index
    %c0_168 = arith.constant 0 : index
    %151 = vector.load %arg14[%c64, %c0_168] : memref<72x512xf32, #tpu.memory_space<vmem>>, vector<4x100xf32>
    tpu.vector_store %arg14[%c64, %c0_168], %115 {strides = array<i32>} : memref<72x512xf32, #tpu.memory_space<vmem>>, vector<4x100xf32>,
    %c68 = arith.constant 68 : index
    %c0_169 = arith.constant 0 : index
    %152 = vector.load %arg14[%c68, %c0_169] : memref<72x512xf32, #tpu.memory_space<vmem>>, vector<4x100xf32>
    tpu.vector_store %arg14[%c68, %c0_169], %117 {strides = array<i32>} : memref<72x512xf32, #tpu.memory_space<vmem>>, vector<4x100xf32>,
    %c64_170 = arith.constant 64 : index
    %c128_171 = arith.constant 128 : index
    %153 = vector.load %arg14[%c64_170, %c128_171] : memref<72x512xf32, #tpu.memory_space<vmem>>, vector<4x100xf32>
    tpu.vector_store %arg14[%c64_170, %c128_171], %125 {strides = array<i32>} : memref<72x512xf32, #tpu.memory_space<vmem>>, vector<4x100xf32>,
    %c68_172 = arith.constant 68 : index
    %c128_173 = arith.constant 128 : index
    %154 = vector.load %arg14[%c68_172, %c128_173] : memref<72x512xf32, #tpu.memory_space<vmem>>, vector<4x100xf32>
    tpu.vector_store %arg14[%c68_172, %c128_173], %127 {strides = array<i32>} : memref<72x512xf32, #tpu.memory_space<vmem>>, vector<4x100xf32>,
    %c64_174 = arith.constant 64 : index
    %c256_175 = arith.constant 256 : index
    %155 = vector.load %arg14[%c64_174, %c256_175] : memref<72x512xf32, #tpu.memory_space<vmem>>, vector<4x100xf32>
    tpu.vector_store %arg14[%c64_174, %c256_175], %147 {strides = array<i32>} : memref<72x512xf32, #tpu.memory_space<vmem>>, vector<4x100xf32>,
    %c68_176 = arith.constant 68 : index
    %c256_177 = arith.constant 256 : index
    %156 = vector.load %arg14[%c68_176, %c256_177] : memref<72x512xf32, #tpu.memory_space<vmem>>, vector<4x100xf32>
    tpu.vector_store %arg14[%c68_176, %c256_177], %149 {strides = array<i32>} : memref<72x512xf32, #tpu.memory_space<vmem>>, vector<4x100xf32>,
    %157 = vector.extract_strided_slice %38 {offsets = [0, 139], sizes = [4, 100], strides = [1, 1]} : vector<4x256xf32> to vector<4x100xf32>
    %c64_178 = arith.constant 64 : index
    %c384_179 = arith.constant 384 : index
    %158 = vector.load %arg14[%c64_178, %c384_179] : memref<72x512xf32, #tpu.memory_space<vmem>>, vector<4x100xf32>
    tpu.vector_store %arg14[%c64_178, %c384_179], %157 {strides = array<i32>} : memref<72x512xf32, #tpu.memory_space<vmem>>, vector<4x100xf32>,
    %159 = vector.extract_strided_slice %47 {offsets = [0, 139], sizes = [4, 100], strides = [1, 1]} : vector<4x256xf32> to vector<4x100xf32>
    %c68_180 = arith.constant 68 : index
    %c384_181 = arith.constant 384 : index
    %160 = vector.load %arg14[%c68_180, %c384_181] : memref<72x512xf32, #tpu.memory_space<vmem>>, vector<4x100xf32>
    tpu.vector_store %arg14[%c68_180, %c384_181], %159 {strides = array<i32>} : memref<72x512xf32, #tpu.memory_space<vmem>>, vector<4x100xf32>,
    %c0_182 = arith.constant 0 : index
    %c0_183 = arith.constant 0 : index
    %161 = vector.load %arg7[%c0_182, %c0_183] : memref<4x72xbf16, #tpu.memory_space<vmem>>, vector<4x72xbf16>
    %c0_184 = arith.constant 0 : index
    %c0_185 = arith.constant 0 : index
    %162 = vector.load %arg14[%c0_184, %c0_185] : memref<72x512xf32, #tpu.memory_space<vmem>>, vector<72x512xf32>
    %163 = arith.truncf %162 : vector<72x512xf32> to vector<72x512xbf16>
    %cst_186 = arith.constant dense<0.000000e+00> : vector<4x512xf32>
    %164 = tpu.matmul %161, %163, %cst_186 {dimension_numbers = #tpu.dot_dimension_numbers<[1], [0], [0], [1], [0, 0, 1, 1], [], []>} : vector<4x72xbf16>, vector<72x512xbf16>, vector<4x512xf32> -> vector<4x512xf32>
    %c0_187 = arith.constant 0 : index
    %c0_188 = arith.constant 0 : index
    %165 = vector.load %arg8[%c0_187, %c0_188] : memref<4x1xf32, #tpu.memory_space<vmem>>, vector<4x1xf32>
    %166 = vector.broadcast %165 : vector<4x1xf32> to vector<4x512xf32>
    %167 = arith.addf %164, %166 : vector<4x512xf32>
    %cst_189 = arith.constant 0.000000e+00 : f32
    %168 = vector.broadcast %cst_189 : f32 to vector<4x512xf32>
    %169 = arith.cmpf ogt, %167, %168 : vector<4x512xf32>
    %cst_190 = arith.constant 1.250000e-01 : f32
    %170 = vector.broadcast %cst_190 : f32 to vector<4x512xf32>
    %171 = arith.mulf %170, %167 : vector<4x512xf32>
    %172 = arith.select %169, %167, %171 : vector<4x512xi1>, vector<4x512xf32>
    %cst_191 = arith.constant 0.000000e+00 : f32
    %173 = vector.shape_cast %5 : vector<1x512xi1> to vector<1x512xi1>
    %174 = vector.broadcast %173 : vector<1x512xi1> to vector<4x512xi1>
    %175 = vector.broadcast %cst_191 : f32 to vector<4x512xf32>
    %176 = arith.select %174, %172, %175 : vector<4x512xi1>, vector<4x512xf32>
    %177 = vector.extract_strided_slice %176 {offsets = [0, 0], sizes = [4, 100], strides = [1, 1]} : vector<4x512xf32> to vector<4x100xf32>
    %c0_192 = arith.constant 0 : index
    %c0_193 = arith.constant 0 : index
    %c128_194 = arith.constant 128 : index
    %178 = vector.load %arg13[%c0_192, %c0_193, %c128_194] : memref<4x4x256xf32, #tpu.memory_space<vmem>>, vector<1x4x100xf32>
    %179 = vector.shape_cast %178 : vector<1x4x100xf32> to vector<4x100xf32>
    %180 = vector.shape_cast %177 : vector<4x100xf32> to vector<1x4x100xf32>
    tpu.vector_store %arg13[%c0_192, %c0_193, %c128_194], %180 {strides = array<i32>} : memref<4x4x256xf32, #tpu.memory_space<vmem>>, vector<1x4x100xf32>,
    %181 = vector.extract_strided_slice %176 {offsets = [0, 128], sizes = [4, 100], strides = [1, 1]} : vector<4x512xf32> to vector<4x100xf32>
    %c1_195 = arith.constant 1 : index
    %c0_196 = arith.constant 0 : index
    %c128_197 = arith.constant 128 : index
    %182 = vector.load %arg13[%c1_195, %c0_196, %c128_197] : memref<4x4x256xf32, #tpu.memory_space<vmem>>, vector<1x4x100xf32>
    %183 = vector.shape_cast %182 : vector<1x4x100xf32> to vector<4x100xf32>
    %184 = vector.shape_cast %181 : vector<4x100xf32> to vector<1x4x100xf32>
    tpu.vector_store %arg13[%c1_195, %c0_196, %c128_197], %184 {strides = array<i32>} : memref<4x4x256xf32, #tpu.memory_space<vmem>>, vector<1x4x100xf32>,
    %185 = vector.extract_strided_slice %176 {offsets = [0, 256], sizes = [4, 100], strides = [1, 1]} : vector<4x512xf32> to vector<4x100xf32>
    %c2_198 = arith.constant 2 : index
    %c0_199 = arith.constant 0 : index
    %c128_200 = arith.constant 128 : index
    %186 = vector.load %arg13[%c2_198, %c0_199, %c128_200] : memref<4x4x256xf32, #tpu.memory_space<vmem>>, vector<1x4x100xf32>
    %187 = vector.shape_cast %186 : vector<1x4x100xf32> to vector<4x100xf32>
    %188 = vector.shape_cast %185 : vector<4x100xf32> to vector<1x4x100xf32>
    tpu.vector_store %arg13[%c2_198, %c0_199, %c128_200], %188 {strides = array<i32>} : memref<4x4x256xf32, #tpu.memory_space<vmem>>, vector<1x4x100xf32>,
    %189 = vector.extract_strided_slice %176 {offsets = [0, 384], sizes = [4, 100], strides = [1, 1]} : vector<4x512xf32> to vector<4x100xf32>
    %c3_201 = arith.constant 3 : index
    %c0_202 = arith.constant 0 : index
    %c128_203 = arith.constant 128 : index
    %190 = vector.load %arg13[%c3_201, %c0_202, %c128_203] : memref<4x4x256xf32, #tpu.memory_space<vmem>>, vector<1x4x100xf32>
    %191 = vector.shape_cast %190 : vector<1x4x100xf32> to vector<4x100xf32>
    %192 = vector.shape_cast %189 : vector<4x100xf32> to vector<1x4x100xf32>
    tpu.vector_store %arg13[%c3_201, %c0_202, %c128_203], %192 {strides = array<i32>} : memref<4x4x256xf32, #tpu.memory_space<vmem>>, vector<1x4x100xf32>,
    %c0_204 = arith.constant 0 : index
    %c0_205 = arith.constant 0 : index
    %c0_206 = arith.constant 0 : index
    %193 = vector.load %arg13[%c0_204, %c0_205, %c0_206] : memref<4x4x256xf32, #tpu.memory_space<vmem>>, vector<1x4x256xf32>
    %194 = vector.shape_cast %193 : vector<1x4x256xf32> to vector<4x256xf32>
    %c1_207 = arith.constant 1 : index
    %c0_208 = arith.constant 0 : index
    %c0_209 = arith.constant 0 : index
    %195 = vector.load %arg13[%c1_207, %c0_208, %c0_209] : memref<4x4x256xf32, #tpu.memory_space<vmem>>, vector<1x4x256xf32>
    %196 = vector.shape_cast %195 : vector<1x4x256xf32> to vector<4x256xf32>
    %c2_210 = arith.constant 2 : index
    %c0_211 = arith.constant 0 : index
    %c0_212 = arith.constant 0 : index
    %197 = vector.load %arg13[%c2_210, %c0_211, %c0_212] : memref<4x4x256xf32, #tpu.memory_space<vmem>>, vector<1x4x256xf32>
    %198 = vector.shape_cast %197 : vector<1x4x256xf32> to vector<4x256xf32>
    %c3_213 = arith.constant 3 : index
    %c0_214 = arith.constant 0 : index
    %c0_215 = arith.constant 0 : index
    %199 = vector.load %arg13[%c3_213, %c0_214, %c0_215] : memref<4x4x256xf32, #tpu.memory_space<vmem>>, vector<1x4x256xf32>
    %200 = vector.shape_cast %199 : vector<1x4x256xf32> to vector<4x256xf32>
    %201 = vector.extract_strided_slice %200 {offsets = [0, 117], sizes = [4, 100], strides = [1, 1]} : vector<4x256xf32> to vector<4x100xf32>
    %c0_216 = arith.constant 0 : index
    %c0_217 = arith.constant 0 : index
    %202 = vector.load %arg15[%c0_216, %c0_217] : memref<36x512xf32, #tpu.memory_space<vmem>>, vector<4x100xf32>
    tpu.vector_store %arg15[%c0_216, %c0_217], %201 {strides = array<i32>} : memref<36x512xf32, #tpu.memory_space<vmem>>, vector<4x100xf32>,
    %203 = vector.extract_strided_slice %198 {offsets = [0, 118], sizes = [4, 100], strides = [1, 1]} : vector<4x256xf32> to vector<4x100xf32>
    %c0_218 = arith.constant 0 : index
    %c128_219 = arith.constant 128 : index
    %204 = vector.load %arg15[%c0_218, %c128_219] : memref<36x512xf32, #tpu.memory_space<vmem>>, vector<4x100xf32>
    tpu.vector_store %arg15[%c0_218, %c128_219], %203 {strides = array<i32>} : memref<36x512xf32, #tpu.memory_space<vmem>>, vector<4x100xf32>,
    %205 = vector.extract_strided_slice %196 {offsets = [0, 127], sizes = [4, 100], strides = [1, 1]} : vector<4x256xf32> to vector<4x100xf32>
    %c0_220 = arith.constant 0 : index
    %c256_221 = arith.constant 256 : index
    %206 = vector.load %arg15[%c0_220, %c256_221] : memref<36x512xf32, #tpu.memory_space<vmem>>, vector<4x100xf32>
    tpu.vector_store %arg15[%c0_220, %c256_221], %205 {strides = array<i32>} : memref<36x512xf32, #tpu.memory_space<vmem>>, vector<4x100xf32>,
    %207 = vector.extract_strided_slice %194 {offsets = [0, 128], sizes = [4, 100], strides = [1, 1]} : vector<4x256xf32> to vector<4x100xf32>
    %c0_222 = arith.constant 0 : index
    %c384_223 = arith.constant 384 : index
    %208 = vector.load %arg15[%c0_222, %c384_223] : memref<36x512xf32, #tpu.memory_space<vmem>>, vector<4x100xf32>
    tpu.vector_store %arg15[%c0_222, %c384_223], %207 {strides = array<i32>} : memref<36x512xf32, #tpu.memory_space<vmem>>, vector<4x100xf32>,
    %c4_224 = arith.constant 4 : index
    %c0_225 = arith.constant 0 : index
    %209 = vector.load %arg15[%c4_224, %c0_225] : memref<36x512xf32, #tpu.memory_space<vmem>>, vector<4x100xf32>
    tpu.vector_store %arg15[%c4_224, %c0_225], %203 {strides = array<i32>} : memref<36x512xf32, #tpu.memory_space<vmem>>, vector<4x100xf32>,
    %210 = vector.extract_strided_slice %200 {offsets = [0, 118], sizes = [4, 100], strides = [1, 1]} : vector<4x256xf32> to vector<4x100xf32>
    %c4_226 = arith.constant 4 : index
    %c128_227 = arith.constant 128 : index
    %211 = vector.load %arg15[%c4_226, %c128_227] : memref<36x512xf32, #tpu.memory_space<vmem>>, vector<4x100xf32>
    tpu.vector_store %arg15[%c4_226, %c128_227], %210 {strides = array<i32>} : memref<36x512xf32, #tpu.memory_space<vmem>>, vector<4x100xf32>,
    %c4_228 = arith.constant 4 : index
    %c256_229 = arith.constant 256 : index
    %212 = vector.load %arg15[%c4_228, %c256_229] : memref<36x512xf32, #tpu.memory_space<vmem>>, vector<4x100xf32>
    tpu.vector_store %arg15[%c4_228, %c256_229], %207 {strides = array<i32>} : memref<36x512xf32, #tpu.memory_space<vmem>>, vector<4x100xf32>,
    %213 = vector.extract_strided_slice %196 {offsets = [0, 128], sizes = [4, 100], strides = [1, 1]} : vector<4x256xf32> to vector<4x100xf32>
    %c4_230 = arith.constant 4 : index
    %c384_231 = arith.constant 384 : index
    %214 = vector.load %arg15[%c4_230, %c384_231] : memref<36x512xf32, #tpu.memory_space<vmem>>, vector<4x100xf32>
    tpu.vector_store %arg15[%c4_230, %c384_231], %213 {strides = array<i32>} : memref<36x512xf32, #tpu.memory_space<vmem>>, vector<4x100xf32>,
    %c8_232 = arith.constant 8 : index
    %c0_233 = arith.constant 0 : index
    %215 = vector.load %arg15[%c8_232, %c0_233] : memref<36x512xf32, #tpu.memory_space<vmem>>, vector<4x100xf32>
    tpu.vector_store %arg15[%c8_232, %c0_233], %210 {strides = array<i32>} : memref<36x512xf32, #tpu.memory_space<vmem>>, vector<4x100xf32>,
    %216 = vector.extract_strided_slice %198 {offsets = [0, 119], sizes = [4, 100], strides = [1, 1]} : vector<4x256xf32> to vector<4x100xf32>
    %c8_234 = arith.constant 8 : index
    %c128_235 = arith.constant 128 : index
    %217 = vector.load %arg15[%c8_234, %c128_235] : memref<36x512xf32, #tpu.memory_space<vmem>>, vector<4x100xf32>
    tpu.vector_store %arg15[%c8_234, %c128_235], %216 {strides = array<i32>} : memref<36x512xf32, #tpu.memory_space<vmem>>, vector<4x100xf32>,
    %c8_236 = arith.constant 8 : index
    %c256_237 = arith.constant 256 : index
    %218 = vector.load %arg15[%c8_236, %c256_237] : memref<36x512xf32, #tpu.memory_space<vmem>>, vector<4x100xf32>
    tpu.vector_store %arg15[%c8_236, %c256_237], %213 {strides = array<i32>} : memref<36x512xf32, #tpu.memory_space<vmem>>, vector<4x100xf32>,
    %219 = vector.extract_strided_slice %194 {offsets = [0, 129], sizes = [4, 100], strides = [1, 1]} : vector<4x256xf32> to vector<4x100xf32>
    %c8_238 = arith.constant 8 : index
    %c384_239 = arith.constant 384 : index
    %220 = vector.load %arg15[%c8_238, %c384_239] : memref<36x512xf32, #tpu.memory_space<vmem>>, vector<4x100xf32>
    tpu.vector_store %arg15[%c8_238, %c384_239], %219 {strides = array<i32>} : memref<36x512xf32, #tpu.memory_space<vmem>>, vector<4x100xf32>,
    %c12_240 = arith.constant 12 : index
    %c0_241 = arith.constant 0 : index
    %221 = vector.load %arg15[%c12_240, %c0_241] : memref<36x512xf32, #tpu.memory_space<vmem>>, vector<4x100xf32>
    tpu.vector_store %arg15[%c12_240, %c0_241], %205 {strides = array<i32>} : memref<36x512xf32, #tpu.memory_space<vmem>>, vector<4x100xf32>,
    %c12_242 = arith.constant 12 : index
    %c128_243 = arith.constant 128 : index
    %222 = vector.load %arg15[%c12_242, %c128_243] : memref<36x512xf32, #tpu.memory_space<vmem>>, vector<4x100xf32>
    tpu.vector_store %arg15[%c12_242, %c128_243], %207 {strides = array<i32>} : memref<36x512xf32, #tpu.memory_space<vmem>>, vector<4x100xf32>,
    %223 = vector.extract_strided_slice %200 {offsets = [0, 127], sizes = [4, 100], strides = [1, 1]} : vector<4x256xf32> to vector<4x100xf32>
    %c12_244 = arith.constant 12 : index
    %c256_245 = arith.constant 256 : index
    %224 = vector.load %arg15[%c12_244, %c256_245] : memref<36x512xf32, #tpu.memory_space<vmem>>, vector<4x100xf32>
    tpu.vector_store %arg15[%c12_244, %c256_245], %223 {strides = array<i32>} : memref<36x512xf32, #tpu.memory_space<vmem>>, vector<4x100xf32>,
    %225 = vector.extract_strided_slice %198 {offsets = [0, 128], sizes = [4, 100], strides = [1, 1]} : vector<4x256xf32> to vector<4x100xf32>
    %c12_246 = arith.constant 12 : index
    %c384_247 = arith.constant 384 : index
    %226 = vector.load %arg15[%c12_246, %c384_247] : memref<36x512xf32, #tpu.memory_space<vmem>>, vector<4x100xf32>
    tpu.vector_store %arg15[%c12_246, %c384_247], %225 {strides = array<i32>} : memref<36x512xf32, #tpu.memory_space<vmem>>, vector<4x100xf32>,
    %c16_248 = arith.constant 16 : index
    %c0_249 = arith.constant 0 : index
    %227 = vector.load %arg15[%c16_248, %c0_249] : memref<36x512xf32, #tpu.memory_space<vmem>>, vector<4x100xf32>
    tpu.vector_store %arg15[%c16_248, %c0_249], %207 {strides = array<i32>} : memref<36x512xf32, #tpu.memory_space<vmem>>, vector<4x100xf32>,
    %c16_250 = arith.constant 16 : index
    %c128_251 = arith.constant 128 : index
    %228 = vector.load %arg15[%c16_250, %c128_251] : memref<36x512xf32, #tpu.memory_space<vmem>>, vector<4x100xf32>
    tpu.vector_store %arg15[%c16_250, %c128_251], %213 {strides = array<i32>} : memref<36x512xf32, #tpu.memory_space<vmem>>, vector<4x100xf32>,
    %c16_252 = arith.constant 16 : index
    %c256_253 = arith.constant 256 : index
    %229 = vector.load %arg15[%c16_252, %c256_253] : memref<36x512xf32, #tpu.memory_space<vmem>>, vector<4x100xf32>
    tpu.vector_store %arg15[%c16_252, %c256_253], %225 {strides = array<i32>} : memref<36x512xf32, #tpu.memory_space<vmem>>, vector<4x100xf32>,
    %230 = vector.extract_strided_slice %200 {offsets = [0, 128], sizes = [4, 100], strides = [1, 1]} : vector<4x256xf32> to vector<4x100xf32>
    %c16_254 = arith.constant 16 : index
    %c384_255 = arith.constant 384 : index
    %231 = vector.load %arg15[%c16_254, %c384_255] : memref<36x512xf32, #tpu.memory_space<vmem>>, vector<4x100xf32>
    tpu.vector_store %arg15[%c16_254, %c384_255], %230 {strides = array<i32>} : memref<36x512xf32, #tpu.memory_space<vmem>>, vector<4x100xf32>,
    %c20_256 = arith.constant 20 : index
    %c0_257 = arith.constant 0 : index
    %232 = vector.load %arg15[%c20_256, %c0_257] : memref<36x512xf32, #tpu.memory_space<vmem>>, vector<4x100xf32>
    tpu.vector_store %arg15[%c20_256, %c0_257], %213 {strides = array<i32>} : memref<36x512xf32, #tpu.memory_space<vmem>>, vector<4x100xf32>,
    %c20_258 = arith.constant 20 : index
    %c128_259 = arith.constant 128 : index
    %233 = vector.load %arg15[%c20_258, %c128_259] : memref<36x512xf32, #tpu.memory_space<vmem>>, vector<4x100xf32>
    tpu.vector_store %arg15[%c20_258, %c128_259], %219 {strides = array<i32>} : memref<36x512xf32, #tpu.memory_space<vmem>>, vector<4x100xf32>,
    %c20_260 = arith.constant 20 : index
    %c256_261 = arith.constant 256 : index
    %234 = vector.load %arg15[%c20_260, %c256_261] : memref<36x512xf32, #tpu.memory_space<vmem>>, vector<4x100xf32>
    tpu.vector_store %arg15[%c20_260, %c256_261], %230 {strides = array<i32>} : memref<36x512xf32, #tpu.memory_space<vmem>>, vector<4x100xf32>,
    %235 = vector.extract_strided_slice %198 {offsets = [0, 129], sizes = [4, 100], strides = [1, 1]} : vector<4x256xf32> to vector<4x100xf32>
    %c20_262 = arith.constant 20 : index
    %c384_263 = arith.constant 384 : index
    %236 = vector.load %arg15[%c20_262, %c384_263] : memref<36x512xf32, #tpu.memory_space<vmem>>, vector<4x100xf32>
    tpu.vector_store %arg15[%c20_262, %c384_263], %235 {strides = array<i32>} : memref<36x512xf32, #tpu.memory_space<vmem>>, vector<4x100xf32>,
    %c24_264 = arith.constant 24 : index
    %c0_265 = arith.constant 0 : index
    %237 = vector.load %arg15[%c24_264, %c0_265] : memref<36x512xf32, #tpu.memory_space<vmem>>, vector<4x100xf32>
    tpu.vector_store %arg15[%c24_264, %c0_265], %223 {strides = array<i32>} : memref<36x512xf32, #tpu.memory_space<vmem>>, vector<4x100xf32>,
    %c24_266 = arith.constant 24 : index
    %c128_267 = arith.constant 128 : index
    %238 = vector.load %arg15[%c24_266, %c128_267] : memref<36x512xf32, #tpu.memory_space<vmem>>, vector<4x100xf32>
    tpu.vector_store %arg15[%c24_266, %c128_267], %225 {strides = array<i32>} : memref<36x512xf32, #tpu.memory_space<vmem>>, vector<4x100xf32>,
    %239 = vector.extract_strided_slice %196 {offsets = [0, 137], sizes = [4, 100], strides = [1, 1]} : vector<4x256xf32> to vector<4x100xf32>
    %c24_268 = arith.constant 24 : index
    %c256_269 = arith.constant 256 : index
    %240 = vector.load %arg15[%c24_268, %c256_269] : memref<36x512xf32, #tpu.memory_space<vmem>>, vector<4x100xf32>
    tpu.vector_store %arg15[%c24_268, %c256_269], %239 {strides = array<i32>} : memref<36x512xf32, #tpu.memory_space<vmem>>, vector<4x100xf32>,
    %241 = vector.extract_strided_slice %194 {offsets = [0, 138], sizes = [4, 100], strides = [1, 1]} : vector<4x256xf32> to vector<4x100xf32>
    %c24_270 = arith.constant 24 : index
    %c384_271 = arith.constant 384 : index
    %242 = vector.load %arg15[%c24_270, %c384_271] : memref<36x512xf32, #tpu.memory_space<vmem>>, vector<4x100xf32>
    tpu.vector_store %arg15[%c24_270, %c384_271], %241 {strides = array<i32>} : memref<36x512xf32, #tpu.memory_space<vmem>>, vector<4x100xf32>,
    %c28_272 = arith.constant 28 : index
    %c0_273 = arith.constant 0 : index
    %243 = vector.load %arg15[%c28_272, %c0_273] : memref<36x512xf32, #tpu.memory_space<vmem>>, vector<4x100xf32>
    tpu.vector_store %arg15[%c28_272, %c0_273], %225 {strides = array<i32>} : memref<36x512xf32, #tpu.memory_space<vmem>>, vector<4x100xf32>,
    %c28_274 = arith.constant 28 : index
    %c128_275 = arith.constant 128 : index
    %244 = vector.load %arg15[%c28_274, %c128_275] : memref<36x512xf32, #tpu.memory_space<vmem>>, vector<4x100xf32>
    tpu.vector_store %arg15[%c28_274, %c128_275], %230 {strides = array<i32>} : memref<36x512xf32, #tpu.memory_space<vmem>>, vector<4x100xf32>,
    %c28_276 = arith.constant 28 : index
    %c256_277 = arith.constant 256 : index
    %245 = vector.load %arg15[%c28_276, %c256_277] : memref<36x512xf32, #tpu.memory_space<vmem>>, vector<4x100xf32>
    tpu.vector_store %arg15[%c28_276, %c256_277], %241 {strides = array<i32>} : memref<36x512xf32, #tpu.memory_space<vmem>>, vector<4x100xf32>,
    %246 = vector.extract_strided_slice %196 {offsets = [0, 138], sizes = [4, 100], strides = [1, 1]} : vector<4x256xf32> to vector<4x100xf32>
    %c28_278 = arith.constant 28 : index
    %c384_279 = arith.constant 384 : index
    %247 = vector.load %arg15[%c28_278, %c384_279] : memref<36x512xf32, #tpu.memory_space<vmem>>, vector<4x100xf32>
    tpu.vector_store %arg15[%c28_278, %c384_279], %246 {strides = array<i32>} : memref<36x512xf32, #tpu.memory_space<vmem>>, vector<4x100xf32>,
    %c32_280 = arith.constant 32 : index
    %c0_281 = arith.constant 0 : index
    %248 = vector.load %arg15[%c32_280, %c0_281] : memref<36x512xf32, #tpu.memory_space<vmem>>, vector<4x100xf32>
    tpu.vector_store %arg15[%c32_280, %c0_281], %230 {strides = array<i32>} : memref<36x512xf32, #tpu.memory_space<vmem>>, vector<4x100xf32>,
    %c32_282 = arith.constant 32 : index
    %c128_283 = arith.constant 128 : index
    %249 = vector.load %arg15[%c32_282, %c128_283] : memref<36x512xf32, #tpu.memory_space<vmem>>, vector<4x100xf32>
    tpu.vector_store %arg15[%c32_282, %c128_283], %235 {strides = array<i32>} : memref<36x512xf32, #tpu.memory_space<vmem>>, vector<4x100xf32>,
    %c32_284 = arith.constant 32 : index
    %c256_285 = arith.constant 256 : index
    %250 = vector.load %arg15[%c32_284, %c256_285] : memref<36x512xf32, #tpu.memory_space<vmem>>, vector<4x100xf32>
    tpu.vector_store %arg15[%c32_284, %c256_285], %246 {strides = array<i32>} : memref<36x512xf32, #tpu.memory_space<vmem>>, vector<4x100xf32>,
    %251 = vector.extract_strided_slice %194 {offsets = [0, 139], sizes = [4, 100], strides = [1, 1]} : vector<4x256xf32> to vector<4x100xf32>
    %c32_286 = arith.constant 32 : index
    %c384_287 = arith.constant 384 : index
    %252 = vector.load %arg15[%c32_286, %c384_287] : memref<36x512xf32, #tpu.memory_space<vmem>>, vector<4x100xf32>
    tpu.vector_store %arg15[%c32_286, %c384_287], %251 {strides = array<i32>} : memref<36x512xf32, #tpu.memory_space<vmem>>, vector<4x100xf32>,
    %c0_288 = arith.constant 0 : index
    %c0_289 = arith.constant 0 : index
    %253 = vector.load %arg9[%c0_288, %c0_289] : memref<4x36xbf16, #tpu.memory_space<vmem>>, vector<4x36xbf16>
    %c0_290 = arith.constant 0 : index
    %c0_291 = arith.constant 0 : index
    %254 = vector.load %arg15[%c0_290, %c0_291] : memref<36x512xf32, #tpu.memory_space<vmem>>, vector<36x512xf32>
    %255 = arith.truncf %254 : vector<36x512xf32> to vector<36x512xbf16>
    %cst_292 = arith.constant dense<0.000000e+00> : vector<4x512xf32>
    %256 = tpu.matmul %253, %255, %cst_292 {dimension_numbers = #tpu.dot_dimension_numbers<[1], [0], [0], [1], [0, 0, 1, 1], [], []>} : vector<4x36xbf16>, vector<36x512xbf16>, vector<4x512xf32> -> vector<4x512xf32>
    %c0_293 = arith.constant 0 : index
    %c0_294 = arith.constant 0 : index
    %257 = vector.load %arg10[%c0_293, %c0_294] : memref<4x1xf32, #tpu.memory_space<vmem>>, vector<4x1xf32>
    %258 = vector.broadcast %257 : vector<4x1xf32> to vector<4x512xf32>
    %259 = arith.addf %256, %258 : vector<4x512xf32>
    %cst_295 = arith.constant 0.000000e+00 : f32
    %260 = vector.broadcast %cst_295 : f32 to vector<4x512xf32>
    %261 = arith.cmpf ogt, %259, %260 : vector<4x512xf32>
    %cst_296 = arith.constant 1.250000e-01 : f32
    %262 = vector.broadcast %cst_296 : f32 to vector<4x512xf32>
    %263 = arith.mulf %262, %259 : vector<4x512xf32>
    %264 = arith.select %261, %259, %263 : vector<4x512xi1>, vector<4x512xf32>
    %cst_297 = arith.constant 0.000000e+00 : f32
    %265 = vector.shape_cast %5 : vector<1x512xi1> to vector<1x512xi1>
    %266 = vector.broadcast %265 : vector<1x512xi1> to vector<4x512xi1>
    %267 = vector.broadcast %cst_297 : f32 to vector<4x512xf32>
    %268 = arith.select %266, %264, %267 : vector<4x512xi1>, vector<4x512xf32>
    %c0_298 = arith.constant 0 : index
    %c0_299 = arith.constant 0 : index
    %c0_300 = arith.constant 0 : index
    %269 = vector.load %arg11[%c0_298, %c0_299, %c0_300] : memref<1x4x512xf32, #tpu.memory_space<vmem>>, vector<1x4x512xf32>
    %270 = vector.shape_cast %269 : vector<1x4x512xf32> to vector<4x512xf32>
    %271 = vector.shape_cast %268 : vector<4x512xf32> to vector<1x4x512xf32>
    tpu.vector_store %arg11[%c0_298, %c0_299, %c0_300], %271 {strides = array<i32>} : memref<1x4x512xf32, #tpu.memory_space<vmem>>, vector<1x4x512xf32>,
    return
  }
  func.func @transform_0(%arg0: i32) -> (i32, i32, i32) {
    %c0_i32 = arith.constant 0 : i32
    %c0_i32_0 = arith.constant 0 : i32
    %c0_i32_1 = arith.constant 0 : i32
    return %arg0, %c0_i32, %c0_i32_0 : i32, i32, i32
  }
  func.func @transform_1(%arg0: i32) -> (i32, i32, i32, i32) {
    %c0_i32 = arith.constant 0 : i32
    %c0_i32_0 = arith.constant 0 : i32
    %c0_i32_1 = arith.constant 0 : i32
    %c0_i32_2 = arith.constant 0 : i32
    return %arg0, %c0_i32, %c0_i32_0, %c0_i32_1 : i32, i32, i32, i32
  }
  func.func @transform_2(%arg0: i32) -> (i32, i32) {
    %c0_i32 = arith.constant 0 : i32
    %c0_i32_0 = arith.constant 0 : i32
    %c0_i32_1 = arith.constant 0 : i32
    return %c0_i32, %c0_i32_0 : i32, i32
  }
  func.func @transform_3(%arg0: i32) -> (i32, i32) {
    %c0_i32 = arith.constant 0 : i32
    %c0_i32_0 = arith.constant 0 : i32
    %c0_i32_1 = arith.constant 0 : i32
    return %c0_i32, %c0_i32_0 : i32, i32
  }
  func.func @transform_4(%arg0: i32) -> (i32, i32) {
    %c0_i32 = arith.constant 0 : i32
    %c0_i32_0 = arith.constant 0 : i32
    %c0_i32_1 = arith.constant 0 : i32
    return %c0_i32, %c0_i32_0 : i32, i32
  }
  func.func @transform_5(%arg0: i32) -> (i32, i32) {
    %c0_i32 = arith.constant 0 : i32
    %c0_i32_0 = arith.constant 0 : i32
    %c0_i32_1 = arith.constant 0 : i32
    return %c0_i32, %c0_i32_0 : i32, i32
  }
  func.func @transform_6(%arg0: i32) -> (i32, i32) {
    %c0_i32 = arith.constant 0 : i32
    %c0_i32_0 = arith.constant 0 : i32
    %c0_i32_1 = arith.constant 0 : i32
    return %c0_i32, %c0_i32_0 : i32, i32
  }
  func.func @transform_7(%arg0: i32) -> (i32, i32) {
    %c0_i32 = arith.constant 0 : i32
    %c0_i32_0 = arith.constant 0 : i32
    %c0_i32_1 = arith.constant 0 : i32
    return %c0_i32, %c0_i32_0 : i32, i32
  }
  func.func @transform_8(%arg0: i32) -> (i32, i32) {
    %c0_i32 = arith.constant 0 : i32
    %c0_i32_0 = arith.constant 0 : i32
    %c0_i32_1 = arith.constant 0 : i32
    return %c0_i32, %c0_i32_0 : i32, i32
  }
  func.func @transform_9(%arg0: i32) -> (i32, i32) {
    %c0_i32 = arith.constant 0 : i32
    %c0_i32_0 = arith.constant 0 : i32
    %c0_i32_1 = arith.constant 0 : i32
    return %c0_i32, %c0_i32_0 : i32, i32
  }
  func.func @transform_10(%arg0: i32) -> (i32, i32, i32) {
    %c0_i32 = arith.constant 0 : i32
    %c0_i32_0 = arith.constant 0 : i32
    %c0_i32_1 = arith.constant 0 : i32
    return %arg0, %c0_i32, %c0_i32_0 : i32, i32, i32
  }
}

</mosaic_0001>

<llo_original>
// kernel: tile.8
$region0: #{tile.8}
  #allocation0 [shape = 's32[1]{0}', space=sflag, size = 0x4, scoped, tag = 'scoped memory for tile.8']
  %s0 = inlined_call_operand.vmem [shape: f32[4], index: 0, kind: input, shape index: {}]
  %s1 = inlined_call_operand.vmem [shape: f32[4,4], index: 1, kind: output, shape index: {}]
  // Predicated region
  $region2: #{tile.8} parent=0 // pred_check
    _
  $region3: #{tile.8} parent=0 // pred_check_branch
    %3 = sbr.rel (0) target = $region5
  $region4: #{tile.8} parent=0 // pred_region
    _
  $region5: #{tile.8} parent=0 // pred_fallthru
    _
  %v4 = vld [vmem:[%s0] ss:$0 sm:$0xff]
  %5 = vst [vmem:[%s1] sm:$0xf] %v4

// kernel: tile.0
$region0: #{tile.0}
  %s0 = inlined_call_operand.vmem [shape: f32[4,4], index: 0, kind: input, shape index: {}]
  %s1 = inlined_call_operand.vmem [shape: f32[16,1], index: 1, kind: output, shape index: {}]
  $region1: #{tile.0} parent=0
    #allocation0 [shape = 'u8[4096]{0}', space=vmem, size = 0x1000, scoped, tag = 'scoped mem for input reshape']
    %s3 = sshllo.u32 0, 4
    %v4 = vld [vmem:[%s0] sm:%s3]
    %5 = vst [vmem:[#allocation0] sm:%s3] %v4
    %v6 = vld [vmem:[#allocation0] sm:$0xf]
    %vm7 = vcmask 7168
    %8 = vst.msk [vmem:[%s1] ss:$4 sm:$0xf] %vm7, %v6
    %v9 = vld [vmem:[#allocation0] sm:$0xf]
    %10 = vrot.lane.b32.xlu0 %v9, 127
    %v11 = vpop.permute.xlu0 %10
    %vm12 = vcmask 7168
    %s13 = scalar_lea.vmem %s1, 1
    %14 = vst.msk [vmem:[%s13] ss:$4 sm:$0xf] %vm12, %v11
    %v15 = vld [vmem:[#allocation0] sm:$0xf]
    %16 = vrot.lane.b32.xlu0 %v15, 126
    %v17 = vpop.permute.xlu0 %16
    %vm18 = vcmask 7168
    %s19 = scalar_lea.vmem %s1, 2
    %20 = vst.msk [vmem:[%s19] ss:$4 sm:$0xf] %vm18, %v17
    %v21 = vld [vmem:[#allocation0] sm:$0xf]
    %22 = vrot.lane.b32.xlu0 %v21, 125
    %v23 = vpop.permute.xlu0 %22
    %vm24 = vcmask 7168
    %s25 = scalar_lea.vmem %s1, 3
    %26 = vst.msk [vmem:[%s25] ss:$4 sm:$0xf] %vm24, %v23

// kernel: unet_up_forward.1
$region0: #{unet_up_forward.1}
  #allocation0 [shape = 'u32[]', space=smem, size = 0x4, offset = 0x4, fixed_abs, tag = 'smem constant byte address 0x4 - core index']
  #allocation1 [shape = 'u32[144,128]{1,0:T(1,128)}', space=vmem, size = 0x12000, scoped, tag = 'internal scratch']
  #allocation2 [shape = 'f32[4,4,256]{2,1,0:T(4,128)}', space=vmem, size = 0x4000, scoped, tag = 'scratch operand']
  #allocation3 [shape = 'f32[4,4,256]{2,1,0:T(4,128)}', space=vmem, size = 0x4000, scoped, tag = 'scratch operand']
  #allocation4 [shape = 'f32[72,512]{1,0:T(8,128)}', space=vmem, size = 0x24000, scoped, tag = 'scratch operand']
  #allocation5 [shape = 'f32[36,512]{1,0:T(8,128)}', space=vmem, size = 0x14000, scoped, tag = 'scratch operand']
  %s0 = inlined_call_operand.vmem [shape: bf16[2,8,128], index: 0, kind: input, shape index: {}]
  %s1 = inlined_call_operand.vmem [shape: bf16[2,4,4,256], index: 1, kind: input, shape index: {}]
  %s2 = inlined_call_operand.vmem [shape: f32[1,128], index: 2, kind: input, shape index: {}]
  %s3 = inlined_call_operand.vmem [shape: f32[1,512], index: 3, kind: input, shape index: {}]
  %s4 = inlined_call_operand.vmem [shape: bf16[16,8], index: 4, kind: input, shape index: {}]
  %s5 = inlined_call_operand.vmem [shape: f32[16,1], index: 5, kind: input, shape index: {}]
  %s6 = inlined_call_operand.vmem [shape: bf16[4,72], index: 6, kind: input, shape index: {}]
  %s7 = inlined_call_operand.vmem [shape: f32[4,1], index: 7, kind: input, shape index: {}]
  %s8 = inlined_call_operand.vmem [shape: bf16[4,36], index: 8, kind: input, shape index: {}]
  %s9 = inlined_call_operand.vmem [shape: f32[4,1], index: 9, kind: input, shape index: {}]
  %s10 = inlined_call_operand.vmem [shape: f32[2,4,512], index: 10, kind: output, shape index: {}]
  %s11 = sld [smem:[#allocation0]]
  $region73: #{unet_up_forward.1} parent=0
    _
  %s13 = ssub.s32 1, %s11
  %s14 = scalar_select 0, %s13, %s11
  loop: start=0, step=1, limit=4
  $region2: #{unet_up_forward.1} parent=0 // loop_pre_header
    _
  $region3: #{unet_up_forward.1} parent=0 // loop_header
    %s16 = sphi 0, %s20
    %p17 = scmp.ge.s32.totalorder %s16, 4
    %s26 = sphi 0, %s28
    %s29 = sphi 0, %s26
    %s30 = sphi 0, %s29
    %s46 = sphi 0, %s30
    %s52 = sphi 0, %s54
    %s55 = sphi 0, %s52
    %s56 = sphi 0, %s55
    %s72 = sphi 0, %s56
    %s76 = sphi 0, %s76
    %s78 = sphi 0, %s76
    %s79 = sphi 0, %s78
    %s93 = sphi 0, %s79
    %s97 = sphi 0, %s97
    %s99 = sphi 0, %s97
    %s100 = sphi 0, %s99
    %s114 = sphi 0, %s100
    %s118 = sphi 0, %s118
    %s120 = sphi 0, %s118
    %s121 = sphi 0, %s120
    %s135 = sphi 0, %s121
    %s139 = sphi 0, %s139
    %s141 = sphi 0, %s139
    %s142 = sphi 0, %s141
    %s156 = sphi 0, %s142
    %s160 = sphi 0, %s160
    %s162 = sphi 0, %s160
    %s163 = sphi 0, %s162
    %s177 = sphi 0, %s163
    %s181 = sphi 0, %s181
    %s183 = sphi 0, %s181
    %s184 = sphi 0, %s183
    %s198 = sphi 0, %s184
    %s202 = sphi 0, %s202
    %s204 = sphi 0, %s202
    %s205 = sphi 0, %s204
    %s219 = sphi 0, %s205
    %s223 = sphi 0, %s223
    %s225 = sphi 0, %s223
    %s226 = sphi 0, %s225
    %s240 = sphi 0, %s226
    %s246 = sphi 0, %s248
    %s249 = sphi 0, %s246
    %s250 = sphi 0, %s249
    %s266 = sphi 0, %s250
  $region4: #{unet_up_forward.1} parent=0 // loop_header_branch
    %19 = sbr.rel (%p17) target = $region8
  $region5: #{unet_up_forward.1} parent=0 // loop_body
    %s21 = ssub.s32 %s16, 1
    %s22 = ssub.s32 %s16, 2
    %s23 = sadd.s32 %s16, 1
    %s24 = ssub.s32 %s16, %s23
    %p25 = scmp.eq.s32.totalorder %s24, 0
    %s27 = sadd.s32 %s26, 1
    %s28 = scalar_select %p25, %s26, %s27
    %p31 = pneg %p25
    %p32 = scmp.eq.s32.totalorder %s16, 1
    %p33 = por %p31, %p32
    %p34 = scmp.ne.s32.totalorder %s26, %s29
    %p35 = scmp.eq.s32.totalorder %s16, 0
    %p36 = por %p34, %p35
    %p37 = scmp.ne.s32.totalorder %s26, %s29
    %p38 = scmp.eq.s32.totalorder %s21, 1
    %p39 = por %p37, %p38
    %p40 = scmp.ne.s32.totalorder %s29, %s30
    %p41 = scmp.eq.s32.totalorder %s21, 0
    %p42 = por %p40, %p41
    %p43 = scmp.ne.s32.totalorder %s29, %s30
    %p44 = scmp.eq.s32.totalorder %s22, 1
    %p45 = por %p43, %p44
    %p47 = scmp.ne.s32.totalorder %s30, %s46
    %p48 = scmp.eq.s32.totalorder %s22, 0
    %p49 = por %p47, %p48
    %s50 = ssub.s32 %s16, %s23
    %p51 = scmp.eq.s32.totalorder %s50, 0
    %s53 = sadd.s32 %s52, 1
    %s54 = scalar_select %p51, %s52, %s53
    %p57 = pneg %p51
    %p58 = scmp.eq.s32.totalorder %s16, 1
    %p59 = por %p57, %p58
    %p60 = scmp.ne.s32.totalorder %s52, %s55
    %p61 = scmp.eq.s32.totalorder %s16, 0
    %p62 = por %p60, %p61
    %p63 = scmp.ne.s32.totalorder %s52, %s55
    %p64 = scmp.eq.s32.totalorder %s21, 1
    %p65 = por %p63, %p64
    %p66 = scmp.ne.s32.totalorder %s55, %s56
    %p67 = scmp.eq.s32.totalorder %s21, 0
    %p68 = por %p66, %p67
    %p69 = scmp.ne.s32.totalorder %s55, %s56
    %p70 = scmp.eq.s32.totalorder %s22, 1
    %p71 = por %p69, %p70
    %p73 = scmp.ne.s32.totalorder %s56, %s72
    %p74 = scmp.eq.s32.totalorder %s22, 0
    %p75 = por %p73, %p74
    %s77 = sadd.s32 %s76, 1
    %p80 = scmp.eq.s32.totalorder %s16, 1
    %p81 = scmp.ne.s32.totalorder %s76, %s78
    %p82 = scmp.eq.s32.totalorder %s16, 0
    %p83 = por %p81, %p82
    %p84 = scmp.ne.s32.totalorder %s76, %s78
    %p85 = scmp.eq.s32.totalorder %s21, 1
    %p86 = por %p84, %p85
    %p87 = scmp.ne.s32.totalorder %s78, %s79
    %p88 = scmp.eq.s32.totalorder %s21, 0
    %p89 = por %p87, %p88
    %p90 = scmp.ne.s32.totalorder %s78, %s79
    %p91 = scmp.eq.s32.totalorder %s22, 1
    %p92 = por %p90, %p91
    %p94 = scmp.ne.s32.totalorder %s79, %s93
    %p95 = scmp.eq.s32.totalorder %s22, 0
    %p96 = por %p94, %p95
    %s98 = sadd.s32 %s97, 1
    %p101 = scmp.eq.s32.totalorder %s16, 1
    %p102 = scmp.ne.s32.totalorder %s97, %s99
    %p103 = scmp.eq.s32.totalorder %s16, 0
    %p104 = por %p102, %p103
    %p105 = scmp.ne.s32.totalorder %s97, %s99
    %p106 = scmp.eq.s32.totalorder %s21, 1
    %p107 = por %p105, %p106
    %p108 = scmp.ne.s32.totalorder %s99, %s100
    %p109 = scmp.eq.s32.totalorder %s21, 0
    %p110 = por %p108, %p109
    %p111 = scmp.ne.s32.totalorder %s99, %s100
    %p112 = scmp.eq.s32.totalorder %s22, 1
    %p113 = por %p111, %p112
    %p115 = scmp.ne.s32.totalorder %s100, %s114
    %p116 = scmp.eq.s32.totalorder %s22, 0
    %p117 = por %p115, %p116
    %s119 = sadd.s32 %s118, 1
    %p122 = scmp.eq.s32.totalorder %s16, 1
    %p123 = scmp.ne.s32.totalorder %s118, %s120
    %p124 = scmp.eq.s32.totalorder %s16, 0
    %p125 = por %p123, %p124
    %p126 = scmp.ne.s32.totalorder %s118, %s120
    %p127 = scmp.eq.s32.totalorder %s21, 1
    %p128 = por %p126, %p127
    %p129 = scmp.ne.s32.totalorder %s120, %s121
    %p130 = scmp.eq.s32.totalorder %s21, 0
    %p131 = por %p129, %p130
    %p132 = scmp.ne.s32.totalorder %s120, %s121
    %p133 = scmp.eq.s32.totalorder %s22, 1
    %p134 = por %p132, %p133
    %p136 = scmp.ne.s32.totalorder %s121, %s135
    %p137 = scmp.eq.s32.totalorder %s22, 0
    %p138 = por %p136, %p137
    %s140 = sadd.s32 %s139, 1
    %p143 = scmp.eq.s32.totalorder %s16, 1
    %p144 = scmp.ne.s32.totalorder %s139, %s141
    %p145 = scmp.eq.s32.totalorder %s16, 0
    %p146 = por %p144, %p145
    %p147 = scmp.ne.s32.totalorder %s139, %s141
    %p148 = scmp.eq.s32.totalorder %s21, 1
    %p149 = por %p147, %p148
    %p150 = scmp.ne.s32.totalorder %s141, %s142
    %p151 = scmp.eq.s32.totalorder %s21, 0
    %p152 = por %p150, %p151
    %p153 = scmp.ne.s32.totalorder %s141, %s142
    %p154 = scmp.eq.s32.totalorder %s22, 1
    %p155 = por %p153, %p154
    %p157 = scmp.ne.s32.totalorder %s142, %s156
    %p158 = scmp.eq.s32.totalorder %s22, 0
    %p159 = por %p157, %p158
    %s161 = sadd.s32 %s160, 1
    %p164 = scmp.eq.s32.totalorder %s16, 1
    %p165 = scmp.ne.s32.totalorder %s160, %s162
    %p166 = scmp.eq.s32.totalorder %s16, 0
    %p167 = por %p165, %p166
    %p168 = scmp.ne.s32.totalorder %s160, %s162
    %p169 = scmp.eq.s32.totalorder %s21, 1
    %p170 = por %p168, %p169
    %p171 = scmp.ne.s32.totalorder %s162, %s163
    %p172 = scmp.eq.s32.totalorder %s21, 0
    %p173 = por %p171, %p172
    %p174 = scmp.ne.s32.totalorder %s162, %s163
    %p175 = scmp.eq.s32.totalorder %s22, 1
    %p176 = por %p174, %p175
    %p178 = scmp.ne.s32.totalorder %s163, %s177
    %p179 = scmp.eq.s32.totalorder %s22, 0
    %p180 = por %p178, %p179
    %s182 = sadd.s32 %s181, 1
    %p185 = scmp.eq.s32.totalorder %s16, 1
    %p186 = scmp.ne.s32.totalorder %s181, %s183
    %p187 = scmp.eq.s32.totalorder %s16, 0
    %p188 = por %p186, %p187
    %p189 = scmp.ne.s32.totalorder %s181, %s183
    %p190 = scmp.eq.s32.totalorder %s21, 1
    %p191 = por %p189, %p190
    %p192 = scmp.ne.s32.totalorder %s183, %s184
    %p193 = scmp.eq.s32.totalorder %s21, 0
    %p194 = por %p192, %p193
    %p195 = scmp.ne.s32.totalorder %s183, %s184
    %p196 = scmp.eq.s32.totalorder %s22, 1
    %p197 = por %p195, %p196
    %p199 = scmp.ne.s32.totalorder %s184, %s198
    %p200 = scmp.eq.s32.totalorder %s22, 0
    %p201 = por %p199, %p200
    %s203 = sadd.s32 %s202, 1
    %p206 = scmp.eq.s32.totalorder %s16, 1
    %p207 = scmp.ne.s32.totalorder %s202, %s204
    %p208 = scmp.eq.s32.totalorder %s16, 0
    %p209 = por %p207, %p208
    %p210 = scmp.ne.s32.totalorder %s202, %s204
    %p211 = scmp.eq.s32.totalorder %s21, 1
    %p212 = por %p210, %p211
    %p213 = scmp.ne.s32.totalorder %s204, %s205
    %p214 = scmp.eq.s32.totalorder %s21, 0
    %p215 = por %p213, %p214
    %p216 = scmp.ne.s32.totalorder %s204, %s205
    %p217 = scmp.eq.s32.totalorder %s22, 1
    %p218 = por %p216, %p217
    %p220 = scmp.ne.s32.totalorder %s205, %s219
    %p221 = scmp.eq.s32.totalorder %s22, 0
    %p222 = por %p220, %p221
    %s224 = sadd.s32 %s223, 1
    %p227 = scmp.eq.s32.totalorder %s16, 1
    %p228 = scmp.ne.s32.totalorder %s223, %s225
    %p229 = scmp.eq.s32.totalorder %s16, 0
    %p230 = por %p228, %p229
    %p231 = scmp.ne.s32.totalorder %s223, %s225
    %p232 = scmp.eq.s32.totalorder %s21, 1
    %p233 = por %p231, %p232
    %p234 = scmp.ne.s32.totalorder %s225, %s226
    %p235 = scmp.eq.s32.totalorder %s21, 0
    %p236 = por %p234, %p235
    %p237 = scmp.ne.s32.totalorder %s225, %s226
    %p238 = scmp.eq.s32.totalorder %s22, 1
    %p239 = por %p237, %p238
    %p241 = scmp.ne.s32.totalorder %s226, %s240
    %p242 = scmp.eq.s32.totalorder %s22, 0
    %p243 = por %p241, %p242
    %s244 = ssub.s32 %s16, %s23
    %p245 = scmp.eq.s32.totalorder %s244, 0
    %s247 = sadd.s32 %s246, 1
    %s248 = scalar_select %p245, %s246, %s247
    %p251 = pneg %p245
    %p252 = scmp.eq.s32.totalorder %s16, 1
    %p253 = por %p251, %p252
    %p254 = scmp.ne.s32.totalorder %s246, %s249
    %p255 = scmp.eq.s32.totalorder %s16, 0
    %p256 = por %p254, %p255
    %p257 = scmp.ne.s32.totalorder %s246, %s249
    %p258 = scmp.eq.s32.totalorder %s21, 1
    %p259 = por %p257, %p258
    %p260 = scmp.ne.s32.totalorder %s249, %s250
    %p261 = scmp.eq.s32.totalorder %s21, 0
    %p262 = por %p260, %p261
    %p263 = scmp.ne.s32.totalorder %s249, %s250
    %p264 = scmp.eq.s32.totalorder %s22, 1
    %p265 = por %p263, %p264
    %p267 = scmp.ne.s32.totalorder %s250, %s266
    %p268 = scmp.eq.s32.totalorder %s22, 0
    %p269 = por %p267, %p268
    %p270 = scmp.le.s32.totalorder 1, %s16
    %p271 = scmp.lt.s32.totalorder %s16, 3
    %p272 = pnand %p270, %p271
    %p273 = pneg %p272
    // Predicated region
    $region9: #{unet_up_forward.1} parent=5 // pred_check
      _
    $region10: #{unet_up_forward.1} parent=5 // pred_check_branch
      %275 = sbr.rel (%p272) target = $region12
    $region11: #{unet_up_forward.1} parent=5 // pred_region
      %s276 = ssub.s32 %s16, 1
      // Predicated region
      $region13: #{unet_up_forward.1} parent=11 // pred_check
        %p277 = pneg %p89
      $region14: #{unet_up_forward.1} parent=11 // pred_check_branch
        %279 = sbr.rel (%p277) target = $region16
      $region15: #{unet_up_forward.1} parent=11 // pred_region
        _
      $region16: #{unet_up_forward.1} parent=11 // pred_fallthru
        _
      // Predicated region
      $region17: #{unet_up_forward.1} parent=11 // pred_check
        %p280 = pneg %p110
      $region18: #{unet_up_forward.1} parent=11 // pred_check_branch
        %282 = sbr.rel (%p280) target = $region20
      $region19: #{unet_up_forward.1} parent=11 // pred_region
        _
      $region20: #{unet_up_forward.1} parent=11 // pred_fallthru
        _
      // Predicated region
      $region21: #{unet_up_forward.1} parent=11 // pred_check
        %p283 = pneg %p131
      $region22: #{unet_up_forward.1} parent=11 // pred_check_branch
        %285 = sbr.rel (%p283) target = $region24
      $region23: #{unet_up_forward.1} parent=11 // pred_region
        _
      $region24: #{unet_up_forward.1} parent=11 // pred_fallthru
        _
      // Predicated region
      $region25: #{unet_up_forward.1} parent=11 // pred_check
        %p286 = pneg %p152
      $region26: #{unet_up_forward.1} parent=11 // pred_check_branch
        %288 = sbr.rel (%p286) target = $region28
      $region27: #{unet_up_forward.1} parent=11 // pred_region
        _
      $region28: #{unet_up_forward.1} parent=11 // pred_fallthru
        _
      // Predicated region
      $region29: #{unet_up_forward.1} parent=11 // pred_check
        %p289 = pneg %p173
      $region30: #{unet_up_forward.1} parent=11 // pred_check_branch
        %291 = sbr.rel (%p289) target = $region32
      $region31: #{unet_up_forward.1} parent=11 // pred_region
        _
      $region32: #{unet_up_forward.1} parent=11 // pred_fallthru
        _
      // Predicated region
      $region33: #{unet_up_forward.1} parent=11 // pred_check
        %p292 = pneg %p194
      $region34: #{unet_up_forward.1} parent=11 // pred_check_branch
        %294 = sbr.rel (%p292) target = $region36
      $region35: #{unet_up_forward.1} parent=11 // pred_region
        _
      $region36: #{unet_up_forward.1} parent=11 // pred_fallthru
        _
      // Predicated region
      $region37: #{unet_up_forward.1} parent=11 // pred_check
        %p295 = pneg %p215
      $region38: #{unet_up_forward.1} parent=11 // pred_check_branch
        %297 = sbr.rel (%p295) target = $region40
      $region39: #{unet_up_forward.1} parent=11 // pred_region
        _
      $region40: #{unet_up_forward.1} parent=11 // pred_fallthru
        _
      // Predicated region
      $region41: #{unet_up_forward.1} parent=11 // pred_check
        %p298 = pneg %p236
      $region42: #{unet_up_forward.1} parent=11 // pred_check_branch
        %300 = sbr.rel (%p298) target = $region44
      $region43: #{unet_up_forward.1} parent=11 // pred_region
        _
      $region44: #{unet_up_forward.1} parent=11 // pred_fallthru
        _
    $region12: #{unet_up_forward.1} parent=5 // pred_fallthru
      _
    %p301 = scmp.lt.s32.totalorder %s16, 2
    // Predicated region
    $region45: #{unet_up_forward.1} parent=5 // pred_check
      %p302 = pneg %p301
    $region46: #{unet_up_forward.1} parent=5 // pred_check_branch
      %304 = sbr.rel (%p302) target = $region48
    $region47: #{unet_up_forward.1} parent=5 // pred_region
      // Predicated region
      $region49: #{unet_up_forward.1} parent=47 // pred_check
        %p305 = pneg %p36
      $region50: #{unet_up_forward.1} parent=47 // pred_check_branch
        %307 = sbr.rel (%p305) target = $region52
      $region51: #{unet_up_forward.1} parent=47 // pred_region
        %p308 = scmp.lt.s32.totalorder %s16, 1
        %s309 = scalar_select %p308, %s16, 1
        %s310 = smul.addr %s309, 4
        %s311 = scalar_lea.vmem %s0, %s310
      $region52: #{unet_up_forward.1} parent=47 // pred_fallthru
        _
      // Predicated region
      $region53: #{unet_up_forward.1} parent=47 // pred_check
        %p312 = pneg %p62
      $region54: #{unet_up_forward.1} parent=47 // pred_check_branch
        %314 = sbr.rel (%p312) target = $region56
      $region55: #{unet_up_forward.1} parent=47 // pred_region
        %p315 = scmp.lt.s32.totalorder %s16, 1
        %s316 = scalar_select %p315, %s16, 1
        %s317 = smul.addr %s316, 8
        %s318 = smul.addr %s317, 2
        %s319 = scalar_lea.vmem %s1, %s318
      $region56: #{unet_up_forward.1} parent=47 // pred_fallthru
        _
    $region48: #{unet_up_forward.1} parent=5 // pred_fallthru
      _
    %p320 = scmp.le.s32.totalorder 1, %s16
    %p321 = scmp.lt.s32.totalorder %s16, 3
    %p322 = pnand %p320, %p321
    %p323 = pneg %p322
    // Predicated region
    $region57: #{unet_up_forward.1} parent=5 // pred_check
      _
    $region58: #{unet_up_forward.1} parent=5 // pred_check_branch
      %325 = sbr.rel (%p322) target = $region60
    $region59: #{unet_up_forward.1} parent=5 // pred_region
      %s326 = ssub.s32 %s16, 1
      %p327 = scmp.lt.s32.totalorder %s21, 1
      %s328 = scalar_select %p327, %s21, 1
      %s329 = smul.addr %s328, 4
      %s330 = scalar_lea.vmem %s0, %s329
      %p331 = pneg %p42
      %p332 = pneg %p39
      %p333 = scmp.lt.s32.totalorder %s21, 1
      %s334 = scalar_select %p333, %s21, 1
      %s335 = smul.addr %s334, 8
      %s336 = smul.addr %s335, 2
      %s337 = scalar_lea.vmem %s1, %s336
      %p338 = pneg %p68
      %p339 = pneg %p65
      %p340 = pneg %p89
      %p341 = pneg %p86
      %p342 = pneg %p110
      %p343 = pneg %p107
      %p344 = pneg %p131
      %p345 = pneg %p128
      %p346 = pneg %p152
      %p347 = pneg %p149
      %p348 = pneg %p173
      %p349 = pneg %p170
      %p350 = pneg %p194
      %p351 = pneg %p191
      %p352 = pneg %p215
      %p353 = pneg %p212
      %p354 = pneg %p236
      %p355 = pneg %p233
      %p356 = pneg %p262
      %p357 = pneg %p259
      %p358 = scmp.lt.s32.totalorder %s21, 1
      %s359 = scalar_select %p358, %s21, 1
      %s360 = smul.addr %s359, 4
      %s361 = smul.addr %s360, 4
      %s362 = scalar_lea.vmem %s10, %s361
      %p363 = scmp.lt.s32.totalorder %s21, 1
      %s364 = scalar_select %p363, %s21, 1
      %s365 = smul.addr %s364, 4
      %s366 = scalar_lea.vmem %s0, %s365
      %p367 = scmp.lt.s32.totalorder %s21, 1
      %s368 = scalar_select %p367, %s21, 1
      %s369 = smul.addr %s368, 8
      %s370 = smul.addr %s369, 2
      %s371 = scalar_lea.vmem %s1, %s370
      %p372 = scmp.lt.s32.totalorder %s21, 1
      %s373 = scalar_select %p372, %s21, 1
      %s374 = smul.addr %s373, 4
      %s375 = smul.addr %s374, 4
      %s376 = scalar_lea.vmem %s10, %s375
      %v378 = vld [vmem:[%s2] sm:$0x1]
      %vm379 = vcmp.gt.f32.partialorder %v378, 0.0
      %v380 = vld [vmem:[%s3] sm:$0xf]
      %vm381 = vcmp.gt.f32.partialorder %v380, 0.0
      %382 = vst [vmem:[#allocation2] sm:$0xff] 0.0
      %383 = vst [vmem:[#allocation2 + $0x8] sm:$0xff] 0.0
      %384 = vst [vmem:[#allocation2 + $0x10] sm:$0xff] 0.0
      %385 = vst [vmem:[#allocation2 + $0x18] sm:$0xff] 0.0
      %386 = vst [vmem:[#allocation3] sm:$0xff] 0.0
      %387 = vst [vmem:[#allocation3 + $0x8] sm:$0xff] 0.0
      %388 = vst [vmem:[#allocation3 + $0x10] sm:$0xff] 0.0
      %389 = vst [vmem:[#allocation3 + $0x18] sm:$0xff] 0.0
      %v390 = vld [vmem:[%s4] sm:$0xf]
      %v391 = vld [vmem:[%s4 + $0x4] sm:$0xf]
      %v392 = vld [vmem:[%s366] sm:$0xf]
      %v393 = vld [vmem:[%s5] sm:$0xff]
      %v394 = vld [vmem:[%s5 + $0x8] sm:$0xff]
      %396 = vset.pattern.permute.xlu0 0
      %397 = vperm.xlu0 %396, %v393
      %v398 = vpop.permute.xlu0 %397
      %401 = vset.pattern.permute.xlu0 0
      %402 = vperm.xlu0 %401, %v394
      %v403 = vpop.permute.xlu0 %402
      %v407 = vunpack.c.l.b16 %v390
      %v408 = vunpack.c.l.b16 %v391
      %v409 = vpack.c.b16 %v408, %v407
      %vm410 = vcmask 64512
      %v412 = vsel %vm410, %v409, 0
      %vm414 = vcmask 1043456
      %v416 = vsel %vm414, %v392, 0
      %418 = vmatprep.subr.bf16.mxu0 0
      %419 = vmatpush1.bf16.msra.mxu0 %v416
      %420 = vmatprep.subr.bf16.mxu0 0
      %421 = vmatpush1.bf16.msra.mxu0 0
      %422 = vmatprep.subr.bf16.mxu0 0
      %423 = vmatpush1.bf16.msra.mxu0 0
      %424 = vmatprep.subr.bf16.mxu0 0
      %425 = vmatpush1.bf16.msra.mxu0 0
      %426 = vmatprep.subr.bf16.mxu0 0
      %427 = vmatpush1.bf16.msra.mxu0 0
      %428 = vmatprep.subr.bf16.mxu0 0
      %429 = vmatpush1.bf16.msra.mxu0 0
      %430 = vmatprep.subr.bf16.mxu0 0
      %431 = vmatpush1.bf16.msra.mxu0 0
      %432 = vmatprep.subr.bf16.mxu0 0
      %433 = vmatpush1.bf16.msra.mxu0 0
      %434 = vmatprep.subr.bf16.mxu0 0
      %435 = vmatpush1.bf16.msra.mxu0 0
      %436 = vmatprep.subr.bf16.mxu0 0
      %437 = vmatpush1.bf16.msra.mxu0 0
      %438 = vmatprep.subr.bf16.mxu0 0
      %439 = vmatpush1.bf16.msra.mxu0 0
      %440 = vmatprep.subr.bf16.mxu0 0
      %441 = vmatpush1.bf16.msra.mxu0 0
      %442 = vmatprep.subr.bf16.mxu0 0
      %443 = vmatpush1.bf16.msra.mxu0 0
      %444 = vmatprep.subr.bf16.mxu0 0
      %445 = vmatpush1.bf16.msra.mxu0 0
      %446 = vmatprep.subr.bf16.mxu0 0
      %447 = vmatpush1.bf16.msra.mxu0 0
      %448 = vmatprep.subr.bf16.mxu0 0
      %449 = vmatpush1.bf16.msra.mxu0 0
      %450 = vmatprep.mubr.bf16.mxu0 0
      %451 = vmatmul.mubr.bf16.gmra.mrb[0].mxu0 %v412
      %v452 = vpop.f32.mrb[0].mxu0
      %v453 = vadd.f32 %v398, %v452
      %v454 = vpop.f32.mrb[0].mxu0
      %v455 = vpop.f32.mrb[0].mxu0
      %v456 = vadd.f32 %v403, %v455
      %v457 = vpop.f32.mrb[0].mxu0
      %458 = vdwg.mxu0
      %v459 = vsel %vm379, 1, 0
      %v460 = vlaneseq
      %v461 = vshrl.u32 %v460, 7
      %v462 = vsub.s32 0, %v461
      %v463 = vrot.slane %v459, %v462
      %vm464 = vcmp.eq.s32.totalorder %v463, 1
      %v465 = vsel %vm464, %v453, 0.0
      %v466 = vsel %vm464, %v456, 0.0
      %vm467 = vcmask 814080
      %468 = vst.msk [vmem:[#allocation2 + $0x4] sm:$0xf] %vm467, %v465
      %v470 = vcombine.high %v465, %v465
      %s472 = scalar_lea.vmem [#allocation2], 8
      %473 = vst.msk [vmem:[%s472 + $0x4] sm:$0xf] %vm467, %v470
      %s474 = scalar_lea.vmem [#allocation2], 16
      %475 = vst.msk [vmem:[%s474 + $0x4] sm:$0xf] %vm467, %v466
      %v477 = vcombine.high %v466, %v466
      %s479 = scalar_lea.vmem [#allocation2], 24
      %480 = vst.msk [vmem:[%s479 + $0x4] sm:$0xf] %vm467, %v477
      %v481 = vld [vmem:[#allocation2] sm:$0xff]
      %v482 = vld [vmem:[%s472] sm:$0xff]
      %v483 = vld [vmem:[%s474] sm:$0xff]
      %v484 = vld [vmem:[%s479] sm:$0xff]
      %v485 = vld [vmem:[%s371] sm:$0xf]
      %v486 = vunpack.c.l.bf16 %v485
      %s487 = scalar_lea.vmem %s371, 4
      %v488 = vld [vmem:[%s487] sm:$0xf]
      %v489 = vunpack.c.l.bf16 %v488
      %s490 = scalar_lea.vmem %s371, 8
      %v491 = vld [vmem:[%s490] sm:$0xf]
      %v492 = vunpack.c.l.bf16 %v491
      %s493 = scalar_lea.vmem %s371, 12
      %v494 = vld [vmem:[%s493] sm:$0xf]
      %v495 = vunpack.c.l.bf16 %v494
      %v497 = vcombine.high %v484, %v484
      %498 = vrot.lane.b32.xlu0 %v484, 11
      %v499 = vpop.permute.xlu0 %498
      %500 = vrot.lane.b32.xlu0 %v497, 11
      %v501 = vpop.permute.xlu0 %500
      %vm502 = vcmask 89088
      %v503 = vsel %vm502, %v499, %v501
      %505 = vst.msk [vmem:[#allocation4] sm:$0xf] %vm467, %v503
      %v507 = vcombine.low %v495, %v495
      %508 = vrot.lane.b32.xlu0 %v507, 11
      %v509 = vpop.permute.xlu0 %508
      %510 = vrot.lane.b32.xlu0 %v495, 11
      %v511 = vpop.permute.xlu0 %510
      %v512 = vsel %vm502, %v509, %v511
      %vm514 = vcmask 818180
      %515 = vst.msk [vmem:[#allocation4] sm:$0xf0] %vm514, %v512
      %v517 = vcombine.high %v483, %v483
      %518 = vrot.lane.b32.xlu0 %v483, 10
      %v519 = vpop.permute.xlu0 %518
      %520 = vrot.lane.b32.xlu0 %v517, 10
      %v521 = vpop.permute.xlu0 %520
      %vm522 = vcmask 80896
      %v523 = vsel %vm522, %v519, %v521
      %525 = vst.msk [vmem:[#allocation4 + $0x8] sm:$0xf] %vm467, %v523
      %v527 = vcombine.low %v492, %v492
      %528 = vrot.lane.b32.xlu0 %v527, 10
      %v529 = vpop.permute.xlu0 %528
      %530 = vrot.lane.b32.xlu0 %v492, 10
      %v531 = vpop.permute.xlu0 %530
      %v532 = vsel %vm522, %v529, %v531
      %534 = vst.msk [vmem:[#allocation4 + $0x8] sm:$0xf0] %vm514, %v532
      %v536 = vcombine.high %v482, %v482
      %537 = vrot.lane.b32.xlu0 %v482, 1
      %v538 = vpop.permute.xlu0 %537
      %539 = vrot.lane.b32.xlu0 %v536, 1
      %v540 = vpop.permute.xlu0 %539
      %vm541 = vcmask 7168
      %v542 = vsel %vm541, %v538, %v540
      %544 = vst.msk [vmem:[#allocation4 + $0x10] sm:$0xf] %vm467, %v542
      %v546 = vcombine.low %v489, %v489
      %547 = vrot.lane.b32.xlu0 %v546, 1
      %v548 = vpop.permute.xlu0 %547
      %549 = vrot.lane.b32.xlu0 %v489, 1
      %v550 = vpop.permute.xlu0 %549
      %v551 = vsel %vm541, %v548, %v550
      %553 = vst.msk [vmem:[#allocation4 + $0x10] sm:$0xf0] %vm514, %v551
      %v555 = vcombine.high %v481, %v481
      %557 = vst.msk [vmem:[#allocation4 + $0x18] sm:$0xf] %vm467, %v555
      %559 = vst.msk [vmem:[#allocation4 + $0x18] sm:$0xf0] %vm514, %v486
      %560 = vst.msk [vmem:[#allocation4 + $0x20] sm:$0xf] %vm467, %v523
      %561 = vst.msk [vmem:[#allocation4 + $0x20] sm:$0xf0] %vm514, %v532
      %562 = vrot.lane.b32.xlu0 %v484, 10
      %v563 = vpop.permute.xlu0 %562
      %564 = vrot.lane.b32.xlu0 %v497, 10
      %v565 = vpop.permute.xlu0 %564
      %v566 = vsel %vm522, %v563, %v565
      %568 = vst.msk [vmem:[#allocation4 + $0x28] sm:$0xf] %vm467, %v566
      %569 = vrot.lane.b32.xlu0 %v507, 10
      %v570 = vpop.permute.xlu0 %569
      %571 = vrot.lane.b32.xlu0 %v495, 10
      %v572 = vpop.permute.xlu0 %571
      %v573 = vsel %vm522, %v570, %v572
      %575 = vst.msk [vmem:[#allocation4 + $0x28] sm:$0xf0] %vm514, %v573
      %576 = vst.msk [vmem:[#allocation4 + $0x30] sm:$0xf] %vm467, %v555
      %577 = vst.msk [vmem:[#allocation4 + $0x30] sm:$0xf0] %vm514, %v486
      %579 = vst.msk [vmem:[#allocation4 + $0x38] sm:$0xf] %vm467, %v536
      %580 = vst.msk [vmem:[#allocation4 + $0x38] sm:$0xf0] %vm514, %v489
      %581 = vst.msk [vmem:[#allocation4 + $0x40] sm:$0xf] %vm467, %v566
      %582 = vst.msk [vmem:[#allocation4 + $0x40] sm:$0xf0] %vm514, %v573
      %583 = vrot.lane.b32.xlu0 %v483, 9
      %v584 = vpop.permute.xlu0 %583
      %585 = vrot.lane.b32.xlu0 %v517, 9
      %v586 = vpop.permute.xlu0 %585
      %vm587 = vcmask 72704
      %v588 = vsel %vm587, %v584, %v586
      %590 = vst.msk [vmem:[#allocation4 + $0x48] sm:$0xf] %vm467, %v588
      %591 = vrot.lane.b32.xlu0 %v527, 9
      %v592 = vpop.permute.xlu0 %591
      %593 = vrot.lane.b32.xlu0 %v492, 9
      %v594 = vpop.permute.xlu0 %593
      %v595 = vsel %vm587, %v592, %v594
      %597 = vst.msk [vmem:[#allocation4 + $0x48] sm:$0xf0] %vm514, %v595
      %598 = vst.msk [vmem:[#allocation4 + $0x50] sm:$0xf] %vm467, %v536
      %599 = vst.msk [vmem:[#allocation4 + $0x50] sm:$0xf0] %vm514, %v489
      %600 = vrot.lane.b32.xlu0 %v555, 127
      %v601 = vpop.permute.xlu0 %600
      %603 = vst.msk [vmem:[#allocation4 + $0x58] sm:$0xf] %vm467, %v601
      %604 = vrot.lane.b32.xlu0 %v486, 127
      %v605 = vpop.permute.xlu0 %604
      %607 = vst.msk [vmem:[#allocation4 + $0x58] sm:$0xf0] %vm514, %v605
      %608 = vst.msk [vmem:[#allocation4 + $0x60] sm:$0xf] %vm467, %v542
      %609 = vst.msk [vmem:[#allocation4 + $0x60] sm:$0xf0] %vm514, %v551
      %610 = vst.msk [vmem:[#allocation4 + $0x68] sm:$0xf] %vm467, %v555
      %611 = vst.msk [vmem:[#allocation4 + $0x68] sm:$0xf0] %vm514, %v486
      %612 = vrot.lane.b32.xlu0 %v484, 1
      %v613 = vpop.permute.xlu0 %612
      %614 = vrot.lane.b32.xlu0 %v497, 1
      %v615 = vpop.permute.xlu0 %614
      %v616 = vsel %vm541, %v613, %v615
      %618 = vst.msk [vmem:[#allocation4 + $0x70] sm:$0xf] %vm467, %v616
      %619 = vrot.lane.b32.xlu0 %v507, 1
      %v620 = vpop.permute.xlu0 %619
      %621 = vrot.lane.b32.xlu0 %v495, 1
      %v622 = vpop.permute.xlu0 %621
      %v623 = vsel %vm541, %v620, %v622
      %625 = vst.msk [vmem:[#allocation4 + $0x70] sm:$0xf0] %vm514, %v623
      %627 = vst.msk [vmem:[#allocation4 + $0x78] sm:$0xf] %vm467, %v517
      %628 = vst.msk [vmem:[#allocation4 + $0x78] sm:$0xf0] %vm514, %v492
      %629 = vst.msk [vmem:[#allocation4 + $0x80] sm:$0xf] %vm467, %v555
      %630 = vst.msk [vmem:[#allocation4 + $0x80] sm:$0xf0] %vm514, %v486
      %631 = vst.msk [vmem:[#allocation4 + $0x88] sm:$0xf] %vm467, %v536
      %632 = vst.msk [vmem:[#allocation4 + $0x88] sm:$0xf0] %vm514, %v489
      %633 = vst.msk [vmem:[#allocation4 + $0x90] sm:$0xf] %vm467, %v517
      %634 = vst.msk [vmem:[#allocation4 + $0x90] sm:$0xf0] %vm514, %v492
      %636 = vst.msk [vmem:[#allocation4 + $0x98] sm:$0xf] %vm467, %v497
      %637 = vst.msk [vmem:[#allocation4 + $0x98] sm:$0xf0] %vm514, %v495
      %638 = vst.msk [vmem:[#allocation4 + $0xa0] sm:$0xf] %vm467, %v536
      %639 = vst.msk [vmem:[#allocation4 + $0xa0] sm:$0xf0] %vm514, %v489
      %640 = vst.msk [vmem:[#allocation4 + $0xa8] sm:$0xf] %vm467, %v601
      %641 = vst.msk [vmem:[#allocation4 + $0xa8] sm:$0xf0] %vm514, %v605
      %642 = vst.msk [vmem:[#allocation4 + $0xb0] sm:$0xf] %vm467, %v497
      %643 = vst.msk [vmem:[#allocation4 + $0xb0] sm:$0xf0] %vm514, %v495
      %644 = vrot.lane.b32.xlu0 %v517, 127
      %v645 = vpop.permute.xlu0 %644
      %647 = vst.msk [vmem:[#allocation4 + $0xb8] sm:$0xf] %vm467, %v645
      %648 = vrot.lane.b32.xlu0 %v492, 127
      %v649 = vpop.permute.xlu0 %648
      %651 = vst.msk [vmem:[#allocation4 + $0xb8] sm:$0xf0] %vm514, %v649
      %652 = vst.msk [vmem:[#allocation4 + $0xc0] sm:$0xf] %vm467, %v616
      %653 = vst.msk [vmem:[#allocation4 + $0xc0] sm:$0xf0] %vm514, %v623
      %654 = vst.msk [vmem:[#allocation4 + $0xc8] sm:$0xf] %vm467, %v517
      %655 = vst.msk [vmem:[#allocation4 + $0xc8] sm:$0xf0] %vm514, %v492
      %656 = vrot.lane.b32.xlu0 %v536, 119
      %v657 = vpop.permute.xlu0 %656
      %659 = vst.msk [vmem:[#allocation4 + $0xd0] sm:$0xf] %vm467, %v657
      %660 = vrot.lane.b32.xlu0 %v489, 119
      %v661 = vpop.permute.xlu0 %660
      %663 = vst.msk [vmem:[#allocation4 + $0xd0] sm:$0xf0] %vm514, %v661
      %664 = vrot.lane.b32.xlu0 %v555, 118
      %v665 = vpop.permute.xlu0 %664
      %667 = vst.msk [vmem:[#allocation4 + $0xd8] sm:$0xf] %vm467, %v665
      %668 = vrot.lane.b32.xlu0 %v486, 118
      %v669 = vpop.permute.xlu0 %668
      %671 = vst.msk [vmem:[#allocation4 + $0xd8] sm:$0xf0] %vm514, %v669
      %672 = vst.msk [vmem:[#allocation4 + $0xe0] sm:$0xf] %vm467, %v517
      %673 = vst.msk [vmem:[#allocation4 + $0xe0] sm:$0xf0] %vm514, %v492
      %674 = vst.msk [vmem:[#allocation4 + $0xe8] sm:$0xf] %vm467, %v497
      %675 = vst.msk [vmem:[#allocation4 + $0xe8] sm:$0xf0] %vm514, %v495
      %676 = vst.msk [vmem:[#allocation4 + $0xf0] sm:$0xf] %vm467, %v665
      %677 = vst.msk [vmem:[#allocation4 + $0xf0] sm:$0xf0] %vm514, %v669
      %678 = vrot.lane.b32.xlu0 %v536, 118
      %v679 = vpop.permute.xlu0 %678
      %681 = vst.msk [vmem:[#allocation4 + $0xf8] sm:$0xf] %vm467, %v679
      %682 = vrot.lane.b32.xlu0 %v489, 118
      %v683 = vpop.permute.xlu0 %682
      %685 = vst.msk [vmem:[#allocation4 + $0xf8] sm:$0xf0] %vm514, %v683
      %686 = vst.msk [vmem:[#allocation4 + $0x100] sm:$0xf] %vm467, %v497
      %687 = vst.msk [vmem:[#allocation4 + $0x100] sm:$0xf0] %vm514, %v495
      %688 = vst.msk [vmem:[#allocation4 + $0x108] sm:$0xf] %vm467, %v645
      %689 = vst.msk [vmem:[#allocation4 + $0x108] sm:$0xf0] %vm514, %v649
      %690 = vst.msk [vmem:[#allocation4 + $0x110] sm:$0xf] %vm467, %v679
      %691 = vst.msk [vmem:[#allocation4 + $0x110] sm:$0xf0] %vm514, %v683
      %692 = vrot.lane.b32.xlu0 %v555, 117
      %v693 = vpop.permute.xlu0 %692
      %695 = vst.msk [vmem:[#allocation4 + $0x118] sm:$0xf] %vm467, %v693
      %696 = vrot.lane.b32.xlu0 %v486, 117
      %v697 = vpop.permute.xlu0 %696
      %699 = vst.msk [vmem:[#allocation4 + $0x118] sm:$0xf0] %vm514, %v697
      %v700 = vld [vmem:[%s6] sm:$0x3]
      %v701 = vld [vmem:[#allocation4] sm:$0xff]
      %v702 = vld [vmem:[#allocation4 + $0x8] sm:$0xff]
      %v703 = vld [vmem:[#allocation4 + $0x10] sm:$0xff]
      %v704 = vld [vmem:[#allocation4 + $0x18] sm:$0xff]
      %v705 = vld [vmem:[#allocation4 + $0x20] sm:$0xff]
      %v706 = vld [vmem:[#allocation4 + $0x28] sm:$0xff]
      %v707 = vld [vmem:[#allocation4 + $0x30] sm:$0xff]
      %v708 = vld [vmem:[#allocation4 + $0x38] sm:$0xff]
      %v709 = vld [vmem:[#allocation4 + $0x40] sm:$0xff]
      %v710 = vld [vmem:[#allocation4 + $0x48] sm:$0xff]
      %v711 = vld [vmem:[#allocation4 + $0x50] sm:$0xff]
      %v712 = vld [vmem:[#allocation4 + $0x58] sm:$0xff]
      %v713 = vld [vmem:[#allocation4 + $0x60] sm:$0xff]
      %v714 = vld [vmem:[#allocation4 + $0x68] sm:$0xff]
      %v715 = vld [vmem:[#allocation4 + $0x70] sm:$0xff]
      %v716 = vld [vmem:[#allocation4 + $0x78] sm:$0xff]
      %v717 = vld [vmem:[#allocation4 + $0x80] sm:$0xff]
      %v718 = vld [vmem:[#allocation4 + $0x88] sm:$0xff]
      %v719 = vld [vmem:[#allocation4 + $0x90] sm:$0xff]
      %v720 = vld [vmem:[#allocation4 + $0x98] sm:$0xff]
      %v721 = vld [vmem:[#allocation4 + $0xa0] sm:$0xff]
      %v722 = vld [vmem:[#allocation4 + $0xa8] sm:$0xff]
      %v723 = vld [vmem:[#allocation4 + $0xb0] sm:$0xff]
      %v724 = vld [vmem:[#allocation4 + $0xb8] sm:$0xff]
      %v725 = vld [vmem:[#allocation4 + $0xc0] sm:$0xff]
      %v726 = vld [vmem:[#allocation4 + $0xc8] sm:$0xff]
      %v727 = vld [vmem:[#allocation4 + $0xd0] sm:$0xff]
      %v728 = vld [vmem:[#allocation4 + $0xd8] sm:$0xff]
      %v729 = vld [vmem:[#allocation4 + $0xe0] sm:$0xff]
      %v730 = vld [vmem:[#allocation4 + $0xe8] sm:$0xff]
      %v731 = vld [vmem:[#allocation4 + $0xf0] sm:$0xff]
      %v732 = vld [vmem:[#allocation4 + $0xf8] sm:$0xff]
      %v733 = vld [vmem:[#allocation4 + $0x100] sm:$0xff]
      %v734 = vld [vmem:[#allocation4 + $0x108] sm:$0xff]
      %v735 = vld [vmem:[#allocation4 + $0x110] sm:$0xff]
      %v736 = vld [vmem:[#allocation4 + $0x118] sm:$0xff]
      %v737 = vpack.c.bf16 %v705, %v701
      %v738 = vpack.c.bf16 %v706, %v702
      %v739 = vpack.c.bf16 %v707, %v703
      %v740 = vpack.c.bf16 %v708, %v704
      %v741 = vpack.c.bf16 %v713, %v709
      %v742 = vpack.c.bf16 %v714, %v710
      %v743 = vpack.c.bf16 %v715, %v711
      %v744 = vpack.c.bf16 %v716, %v712
      %v745 = vpack.c.bf16 %v721, %v717
      %v746 = vpack.c.bf16 %v722, %v718
      %v747 = vpack.c.bf16 %v723, %v719
      %v748 = vpack.c.bf16 %v724, %v720
      %v749 = vpack.c.bf16 %v729, %v725
      %v750 = vpack.c.bf16 %v730, %v726
      %v751 = vpack.c.bf16 %v731, %v727
      %v752 = vpack.c.bf16 %v732, %v728
      %v753 = vpack.c.bf16 %v733, %v733
      %v754 = vpack.c.bf16 %v734, %v734
      %v755 = vpack.c.bf16 %v735, %v735
      %v756 = vpack.c.bf16 %v736, %v736
      %v757 = vld [vmem:[%s7] sm:$0xf]
      %759 = vset.pattern.permute.xlu0 0
      %760 = vperm.xlu0 %759, %v757
      %v761 = vpop.permute.xlu0 %760
      %vm763 = vcmask 588800
      %v765 = vsel %vm763, %v700, 0
      %v768 = vsel %vm414, %v753, 0
      %v771 = vsel %vm414, %v754, 0
      %v774 = vsel %vm414, %v755, 0
      %v777 = vsel %vm414, %v756, 0
      %779 = vmatprep.subr.bf16.mxu0 %v738
      %780 = vmatpush1.bf16.msra.mxu0 %v737
      %781 = vmatprep.subr.bf16.mxu0 %v742
      %782 = vmatpush1.bf16.msra.mxu0 %v741
      %783 = vmatprep.subr.bf16.mxu0 %v746
      %784 = vmatpush1.bf16.msra.mxu0 %v745
      %785 = vmatprep.subr.bf16.mxu0 %v750
      %786 = vmatpush1.bf16.msra.mxu0 %v749
      %787 = vmatprep.subr.bf16.mxu0 %v771
      %788 = vmatpush1.bf16.msra.mxu0 %v768
      %789 = vmatprep.subr.bf16.mxu0 0
      %790 = vmatpush1.bf16.msra.mxu0 0
      %791 = vmatprep.subr.bf16.mxu0 0
      %792 = vmatpush1.bf16.msra.mxu0 0
      %793 = vmatprep.subr.bf16.mxu0 0
      %794 = vmatpush1.bf16.msra.mxu0 0
      %795 = vmatprep.subr.bf16.mxu0 0
      %796 = vmatpush1.bf16.msra.mxu0 0
      %797 = vmatprep.subr.bf16.mxu0 0
      %798 = vmatpush1.bf16.msra.mxu0 0
      %799 = vmatprep.subr.bf16.mxu0 0
      %800 = vmatpush1.bf16.msra.mxu0 0
      %801 = vmatprep.subr.bf16.mxu0 0
      %802 = vmatpush1.bf16.msra.mxu0 0
      %803 = vmatprep.subr.bf16.mxu0 0
      %804 = vmatpush1.bf16.msra.mxu0 0
      %805 = vmatprep.subr.bf16.mxu0 0
      %806 = vmatpush1.bf16.msra.mxu0 0
      %807 = vmatprep.subr.bf16.mxu0 0
      %808 = vmatpush1.bf16.msra.mxu0 0
      %809 = vmatprep.subr.bf16.mxu0 0
      %810 = vmatpush1.bf16.msra.mxu0 0
      %811 = vmatprep.mubr.bf16.mxu0 0
      %812 = vmatmul.mubr.bf16.gmra.mrb[0].mxu0 %v765
      %v813 = vpop.f32.mrb[0].mxu0
      %v814 = vadd.f32 %v761, %v813
      %v815 = vpop.f32.mrb[0].mxu0
      %v816 = vadd.f32 %v761, %v815
      %v817 = vpop.f32.mrb[0].mxu0
      %v818 = vpop.f32.mrb[0].mxu0
      %819 = vdwg.mxu0
      %820 = vmatprep.subr.bf16.mxu0 %v740
      %821 = vmatpush1.bf16.msra.mxu0 %v739
      %822 = vmatprep.subr.bf16.mxu0 %v744
      %823 = vmatpush1.bf16.msra.mxu0 %v743
      %824 = vmatprep.subr.bf16.mxu0 %v748
      %825 = vmatpush1.bf16.msra.mxu0 %v747
      %826 = vmatprep.subr.bf16.mxu0 %v752
      %827 = vmatpush1.bf16.msra.mxu0 %v751
      %828 = vmatprep.subr.bf16.mxu0 %v777
      %829 = vmatpush1.bf16.msra.mxu0 %v774
      %830 = vmatprep.subr.bf16.mxu0 0
      %831 = vmatpush1.bf16.msra.mxu0 0
      %832 = vmatprep.subr.bf16.mxu0 0
      %833 = vmatpush1.bf16.msra.mxu0 0
      %834 = vmatprep.subr.bf16.mxu0 0
      %835 = vmatpush1.bf16.msra.mxu0 0
      %836 = vmatprep.subr.bf16.mxu0 0
      %837 = vmatpush1.bf16.msra.mxu0 0
      %838 = vmatprep.subr.bf16.mxu0 0
      %839 = vmatpush1.bf16.msra.mxu0 0
      %840 = vmatprep.subr.bf16.mxu0 0
      %841 = vmatpush1.bf16.msra.mxu0 0
      %842 = vmatprep.subr.bf16.mxu0 0
      %843 = vmatpush1.bf16.msra.mxu0 0
      %844 = vmatprep.subr.bf16.mxu0 0
      %845 = vmatpush1.bf16.msra.mxu0 0
      %846 = vmatprep.subr.bf16.mxu0 0
      %847 = vmatpush1.bf16.msra.mxu0 0
      %848 = vmatprep.subr.bf16.mxu0 0
      %849 = vmatpush1.bf16.msra.mxu0 0
      %850 = vmatprep.subr.bf16.mxu0 0
      %851 = vmatpush1.bf16.msra.mxu0 0
      %852 = vmatprep.mubr.bf16.mxu0 0
      %853 = vmatmul.mubr.bf16.gmra.mrb[0].mxu0 %v765
      %v854 = vpop.f32.mrb[0].mxu0
      %v855 = vadd.f32 %v761, %v854
      %v856 = vpop.f32.mrb[0].mxu0
      %v857 = vadd.f32 %v761, %v856
      %v858 = vpop.f32.mrb[0].mxu0
      %v859 = vpop.f32.mrb[0].mxu0
      %860 = vdwg.mxu0
      %vm861 = vcmp.gt.f32.partialorder %v814, 0.0
      %vm862 = vcmp.gt.f32.partialorder %v816, 0.0
      %vm863 = vcmp.gt.f32.partialorder %v855, 0.0
      %vm864 = vcmp.gt.f32.partialorder %v857, 0.0
      %v865 = vmul.f32 %v814, 0.125
      %v866 = vmul.f32 %v816, 0.125
      %v867 = vmul.f32 %v855, 0.125
      %v868 = vmul.f32 %v857, 0.125
      %v869 = vsel %vm861, %v814, %v865
      %v870 = vsel %vm862, %v816, %v866
      %v871 = vsel %vm863, %v855, %v867
      %v872 = vsel %vm864, %v857, %v868
      %v873 = vsel %vm381, 1, 0
      %v874 = vlaneseq
      %v875 = vshrl.u32 %v874, 7
      %v876 = vsub.s32 0, %v875
      %v877 = vrot.slane %v873, %v876
      %v878 = vlaneseq
      %v879 = vshrl.u32 %v878, 7
      %v880 = vsub.s32 1, %v879
      %v881 = vrot.slane %v873, %v880
      %v882 = vlaneseq
      %v883 = vshrl.u32 %v882, 7
      %v884 = vsub.s32 2, %v883
      %v885 = vrot.slane %v873, %v884
      %v886 = vlaneseq
      %v887 = vshrl.u32 %v886, 7
      %v888 = vsub.s32 3, %v887
      %v889 = vrot.slane %v873, %v888
      %vm890 = vcmp.eq.s32.totalorder %v877, 1
      %vm891 = vcmp.eq.s32.totalorder %v881, 1
      %vm892 = vcmp.eq.s32.totalorder %v885, 1
      %vm893 = vcmp.eq.s32.totalorder %v889, 1
      %v894 = vsel %vm890, %v869, 0.0
      %v895 = vsel %vm891, %v870, 0.0
      %v896 = vsel %vm892, %v871, 0.0
      %v897 = vsel %vm893, %v872, 0.0
      %898 = vst.msk [vmem:[#allocation3 + $0x4] sm:$0xf] %vm467, %v894
      %s899 = scalar_lea.vmem [#allocation3], 8
      %900 = vst.msk [vmem:[%s899 + $0x4] sm:$0xf] %vm467, %v895
      %s901 = scalar_lea.vmem [#allocation3], 16
      %902 = vst.msk [vmem:[%s901 + $0x4] sm:$0xf] %vm467, %v896
      %s903 = scalar_lea.vmem [#allocation3], 24
      %904 = vst.msk [vmem:[%s903 + $0x4] sm:$0xf] %vm467, %v897
      %v905 = vld [vmem:[#allocation3] sm:$0xff]
      %v906 = vld [vmem:[%s899] sm:$0xff]
      %v907 = vld [vmem:[%s901] sm:$0xff]
      %v908 = vld [vmem:[%s903] sm:$0xff]
      %v910 = vcombine.high %v908, %v908
      %911 = vrot.lane.b32.xlu0 %v908, 11
      %v912 = vpop.permute.xlu0 %911
      %913 = vrot.lane.b32.xlu0 %v910, 11
      %v914 = vpop.permute.xlu0 %913
      %v915 = vsel %vm502, %v912, %v914
      %917 = vst.msk [vmem:[#allocation5] sm:$0xf] %vm467, %v915
      %v919 = vcombine.high %v907, %v907
      %920 = vrot.lane.b32.xlu0 %v907, 10
      %v921 = vpop.permute.xlu0 %920
      %922 = vrot.lane.b32.xlu0 %v919, 10
      %v923 = vpop.permute.xlu0 %922
      %v924 = vsel %vm522, %v921, %v923
      %926 = vst.msk [vmem:[#allocation5 + $0x8] sm:$0xf] %vm467, %v924
      %v928 = vcombine.high %v906, %v906
      %929 = vrot.lane.b32.xlu0 %v906, 1
      %v930 = vpop.permute.xlu0 %929
      %931 = vrot.lane.b32.xlu0 %v928, 1
      %v932 = vpop.permute.xlu0 %931
      %v933 = vsel %vm541, %v930, %v932
      %935 = vst.msk [vmem:[#allocation5 + $0x10] sm:$0xf] %vm467, %v933
      %v937 = vcombine.high %v905, %v905
      %939 = vst.msk [vmem:[#allocation5 + $0x18] sm:$0xf] %vm467, %v937
      %v940 = vcombine.low %v907, %v907
      %941 = vrot.lane.b32.xlu0 %v940, 10
      %v942 = vpop.permute.xlu0 %941
      %v943 = vsel %vm522, %v942, %v921
      %945 = vst.msk [vmem:[#allocation5] sm:$0xf0] %vm514, %v943
      %v946 = vcombine.low %v908, %v908
      %947 = vrot.lane.b32.xlu0 %v946, 10
      %v948 = vpop.permute.xlu0 %947
      %949 = vrot.lane.b32.xlu0 %v908, 10
      %v950 = vpop.permute.xlu0 %949
      %v951 = vsel %vm522, %v948, %v950
      %953 = vst.msk [vmem:[#allocation5 + $0x8] sm:$0xf0] %vm514, %v951
      %954 = vst.msk [vmem:[#allocation5 + $0x10] sm:$0xf0] %vm514, %v905
      %955 = vst.msk [vmem:[#allocation5 + $0x18] sm:$0xf0] %vm514, %v906
      %956 = vrot.lane.b32.xlu0 %v910, 10
      %v957 = vpop.permute.xlu0 %956
      %v958 = vsel %vm522, %v950, %v957
      %960 = vst.msk [vmem:[#allocation5 + $0x20] sm:$0xf] %vm467, %v958
      %961 = vrot.lane.b32.xlu0 %v907, 9
      %v962 = vpop.permute.xlu0 %961
      %963 = vrot.lane.b32.xlu0 %v919, 9
      %v964 = vpop.permute.xlu0 %963
      %v965 = vsel %vm587, %v962, %v964
      %967 = vst.msk [vmem:[#allocation5 + $0x28] sm:$0xf] %vm467, %v965
      %969 = vst.msk [vmem:[#allocation5 + $0x30] sm:$0xf] %vm467, %v928
      %970 = vrot.lane.b32.xlu0 %v937, 127
      %v971 = vpop.permute.xlu0 %970
      %973 = vst.msk [vmem:[#allocation5 + $0x38] sm:$0xf] %vm467, %v971
      %v974 = vcombine.low %v906, %v906
      %975 = vrot.lane.b32.xlu0 %v974, 1
      %v976 = vpop.permute.xlu0 %975
      %v977 = vsel %vm541, %v976, %v930
      %979 = vst.msk [vmem:[#allocation5 + $0x20] sm:$0xf0] %vm514, %v977
      %980 = vst.msk [vmem:[#allocation5 + $0x28] sm:$0xf0] %vm514, %v905
      %981 = vrot.lane.b32.xlu0 %v946, 1
      %v982 = vpop.permute.xlu0 %981
      %983 = vrot.lane.b32.xlu0 %v908, 1
      %v984 = vpop.permute.xlu0 %983
      %v985 = vsel %vm541, %v982, %v984
      %987 = vst.msk [vmem:[#allocation5 + $0x30] sm:$0xf0] %vm514, %v985
      %988 = vst.msk [vmem:[#allocation5 + $0x38] sm:$0xf0] %vm514, %v907
      %989 = vst.msk [vmem:[#allocation5 + $0x40] sm:$0xf] %vm467, %v937
      %990 = vst.msk [vmem:[#allocation5 + $0x48] sm:$0xf] %vm467, %v928
      %992 = vst.msk [vmem:[#allocation5 + $0x50] sm:$0xf] %vm467, %v919
      %994 = vst.msk [vmem:[#allocation5 + $0x58] sm:$0xf] %vm467, %v910
      %995 = vst.msk [vmem:[#allocation5 + $0x40] sm:$0xf0] %vm514, %v906
      %996 = vrot.lane.b32.xlu0 %v905, 127
      %v997 = vpop.permute.xlu0 %996
      %999 = vst.msk [vmem:[#allocation5 + $0x48] sm:$0xf0] %vm514, %v997
      %1000 = vst.msk [vmem:[#allocation5 + $0x50] sm:$0xf0] %vm514, %v908
      %1001 = vrot.lane.b32.xlu0 %v907, 127
      %v1002 = vpop.permute.xlu0 %1001
      %1004 = vst.msk [vmem:[#allocation5 + $0x58] sm:$0xf0] %vm514, %v1002
      %1005 = vrot.lane.b32.xlu0 %v910, 1
      %v1006 = vpop.permute.xlu0 %1005
      %v1007 = vsel %vm541, %v984, %v1006
      %1009 = vst.msk [vmem:[#allocation5 + $0x60] sm:$0xf] %vm467, %v1007
      %1010 = vst.msk [vmem:[#allocation5 + $0x68] sm:$0xf] %vm467, %v919
      %1011 = vrot.lane.b32.xlu0 %v928, 119
      %v1012 = vpop.permute.xlu0 %1011
      %1014 = vst.msk [vmem:[#allocation5 + $0x70] sm:$0xf] %vm467, %v1012
      %1015 = vrot.lane.b32.xlu0 %v937, 118
      %v1016 = vpop.permute.xlu0 %1015
      %1018 = vst.msk [vmem:[#allocation5 + $0x78] sm:$0xf] %vm467, %v1016
      %1019 = vst.msk [vmem:[#allocation5 + $0x60] sm:$0xf0] %vm514, %v907
      %1020 = vst.msk [vmem:[#allocation5 + $0x68] sm:$0xf0] %vm514, %v908
      %1021 = vrot.lane.b32.xlu0 %v905, 118
      %v1022 = vpop.permute.xlu0 %1021
      %1024 = vst.msk [vmem:[#allocation5 + $0x70] sm:$0xf0] %vm514, %v1022
      %1025 = vrot.lane.b32.xlu0 %v906, 118
      %v1026 = vpop.permute.xlu0 %1025
      %1028 = vst.msk [vmem:[#allocation5 + $0x78] sm:$0xf0] %vm514, %v1026
      %1029 = vst.msk [vmem:[#allocation5 + $0x80] sm:$0xf] %vm467, %v910
      %1030 = vrot.lane.b32.xlu0 %v919, 127
      %v1031 = vpop.permute.xlu0 %1030
      %1033 = vst.msk [vmem:[#allocation5 + $0x88] sm:$0xf] %vm467, %v1031
      %1034 = vrot.lane.b32.xlu0 %v928, 118
      %v1035 = vpop.permute.xlu0 %1034
      %1037 = vst.msk [vmem:[#allocation5 + $0x90] sm:$0xf] %vm467, %v1035
      %1038 = vrot.lane.b32.xlu0 %v937, 117
      %v1039 = vpop.permute.xlu0 %1038
      %1041 = vst.msk [vmem:[#allocation5 + $0x98] sm:$0xf] %vm467, %v1039
      %v1042 = vld [vmem:[%s8] sm:$0x3]
      %v1043 = vld [vmem:[#allocation5] sm:$0xff]
      %v1044 = vld [vmem:[#allocation5 + $0x8] sm:$0xff]
      %v1045 = vld [vmem:[#allocation5 + $0x10] sm:$0xff]
      %v1046 = vld [vmem:[#allocation5 + $0x18] sm:$0xff]
      %v1047 = vld [vmem:[#allocation5 + $0x20] sm:$0xff]
      %v1048 = vld [vmem:[#allocation5 + $0x28] sm:$0xff]
      %v1049 = vld [vmem:[#allocation5 + $0x30] sm:$0xff]
      %v1050 = vld [vmem:[#allocation5 + $0x38] sm:$0xff]
      %v1051 = vld [vmem:[#allocation5 + $0x40] sm:$0xff]
      %v1052 = vld [vmem:[#allocation5 + $0x48] sm:$0xff]
      %v1053 = vld [vmem:[#allocation5 + $0x50] sm:$0xff]
      %v1054 = vld [vmem:[#allocation5 + $0x58] sm:$0xff]
      %v1055 = vld [vmem:[#allocation5 + $0x60] sm:$0xff]
      %v1056 = vld [vmem:[#allocation5 + $0x68] sm:$0xff]
      %v1057 = vld [vmem:[#allocation5 + $0x70] sm:$0xff]
      %v1058 = vld [vmem:[#allocation5 + $0x78] sm:$0xff]
      %v1059 = vld [vmem:[#allocation5 + $0x80] sm:$0xf]
      %v1060 = vld [vmem:[#allocation5 + $0x88] sm:$0xf]
      %v1061 = vld [vmem:[#allocation5 + $0x90] sm:$0xf]
      %v1062 = vld [vmem:[#allocation5 + $0x98] sm:$0xf]
      %v1063 = vpack.c.bf16 %v1047, %v1043
      %v1064 = vpack.c.bf16 %v1048, %v1044
      %v1065 = vpack.c.bf16 %v1049, %v1045
      %v1066 = vpack.c.bf16 %v1050, %v1046
      %v1067 = vpack.c.bf16 %v1055, %v1051
      %v1068 = vpack.c.bf16 %v1056, %v1052
      %v1069 = vpack.c.bf16 %v1057, %v1053
      %v1070 = vpack.c.bf16 %v1058, %v1054
      %v1071 = vpack.c.bf16 %v1059, %v1059
      %v1072 = vpack.c.bf16 %v1060, %v1060
      %v1073 = vpack.c.bf16 %v1061, %v1061
      %v1074 = vpack.c.bf16 %v1062, %v1062
      %v1075 = vld [vmem:[%s9] sm:$0xf]
      %1077 = vset.pattern.permute.xlu0 0
      %1078 = vperm.xlu0 %1077, %v1075
      %v1079 = vpop.permute.xlu0 %1078
      %vm1081 = vcmask 293888
      %v1083 = vsel %vm1081, %v1042, 0
      %vm1085 = vcmask 1041408
      %v1087 = vsel %vm1085, %v1071, 0
      %v1090 = vsel %vm1085, %v1072, 0
      %v1093 = vsel %vm1085, %v1073, 0
      %v1096 = vsel %vm1085, %v1074, 0
      %1098 = vmatprep.subr.bf16.mxu0 %v1064
      %1099 = vmatpush1.bf16.msra.mxu0 %v1063
      %1100 = vmatprep.subr.bf16.mxu0 %v1068
      %1101 = vmatpush1.bf16.msra.mxu0 %v1067
      %1102 = vmatprep.subr.bf16.mxu0 %v1090
      %1103 = vmatpush1.bf16.msra.mxu0 %v1087
      %1104 = vmatprep.subr.bf16.mxu0 0
      %1105 = vmatpush1.bf16.msra.mxu0 0
      %1106 = vmatprep.subr.bf16.mxu0 0
      %1107 = vmatpush1.bf16.msra.mxu0 0
      %1108 = vmatprep.subr.bf16.mxu0 0
      %1109 = vmatpush1.bf16.msra.mxu0 0
      %1110 = vmatprep.subr.bf16.mxu0 0
      %1111 = vmatpush1.bf16.msra.mxu0 0
      %1112 = vmatprep.subr.bf16.mxu0 0
      %1113 = vmatpush1.bf16.msra.mxu0 0
      %1114 = vmatprep.subr.bf16.mxu0 0
      %1115 = vmatpush1.bf16.msra.mxu0 0
      %1116 = vmatprep.subr.bf16.mxu0 0
      %1117 = vmatpush1.bf16.msra.mxu0 0
      %1118 = vmatprep.subr.bf16.mxu0 0
      %1119 = vmatpush1.bf16.msra.mxu0 0
      %1120 = vmatprep.subr.bf16.mxu0 0
      %1121 = vmatpush1.bf16.msra.mxu0 0
      %1122 = vmatprep.subr.bf16.mxu0 0
      %1123 = vmatpush1.bf16.msra.mxu0 0
      %1124 = vmatprep.subr.bf16.mxu0 0
      %1125 = vmatpush1.bf16.msra.mxu0 0
      %1126 = vmatprep.subr.bf16.mxu0 0
      %1127 = vmatpush1.bf16.msra.mxu0 0
      %1128 = vmatprep.subr.bf16.mxu0 0
      %1129 = vmatpush1.bf16.msra.mxu0 0
      %1130 = vmatprep.mubr.bf16.mxu0 0
      %1131 = vmatmul.mubr.bf16.gmra.mrb[0].mxu0 %v1083
      %v1132 = vpop.f32.mrb[0].mxu0
      %v1133 = vadd.f32 %v1079, %v1132
      %v1134 = vpop.f32.mrb[0].mxu0
      %v1135 = vadd.f32 %v1079, %v1134
      %v1136 = vpop.f32.mrb[0].mxu0
      %v1137 = vpop.f32.mrb[0].mxu0
      %1138 = vdwg.mxu0
      %1139 = vmatprep.subr.bf16.mxu0 %v1066
      %1140 = vmatpush1.bf16.msra.mxu0 %v1065
      %1141 = vmatprep.subr.bf16.mxu0 %v1070
      %1142 = vmatpush1.bf16.msra.mxu0 %v1069
      %1143 = vmatprep.subr.bf16.mxu0 %v1096
      %1144 = vmatpush1.bf16.msra.mxu0 %v1093
      %1145 = vmatprep.subr.bf16.mxu0 0
      %1146 = vmatpush1.bf16.msra.mxu0 0
      %1147 = vmatprep.subr.bf16.mxu0 0
      %1148 = vmatpush1.bf16.msra.mxu0 0
      %1149 = vmatprep.subr.bf16.mxu0 0
      %1150 = vmatpush1.bf16.msra.mxu0 0
      %1151 = vmatprep.subr.bf16.mxu0 0
      %1152 = vmatpush1.bf16.msra.mxu0 0
      %1153 = vmatprep.subr.bf16.mxu0 0
      %1154 = vmatpush1.bf16.msra.mxu0 0
      %1155 = vmatprep.subr.bf16.mxu0 0
      %1156 = vmatpush1.bf16.msra.mxu0 0
      %1157 = vmatprep.subr.bf16.mxu0 0
      %1158 = vmatpush1.bf16.msra.mxu0 0
      %1159 = vmatprep.subr.bf16.mxu0 0
      %1160 = vmatpush1.bf16.msra.mxu0 0
      %1161 = vmatprep.subr.bf16.mxu0 0
      %1162 = vmatpush1.bf16.msra.mxu0 0
      %1163 = vmatprep.subr.bf16.mxu0 0
      %1164 = vmatpush1.bf16.msra.mxu0 0
      %1165 = vmatprep.subr.bf16.mxu0 0
      %1166 = vmatpush1.bf16.msra.mxu0 0
      %1167 = vmatprep.subr.bf16.mxu0 0
      %1168 = vmatpush1.bf16.msra.mxu0 0
      %1169 = vmatprep.subr.bf16.mxu0 0
      %1170 = vmatpush1.bf16.msra.mxu0 0
      %1171 = vmatprep.mubr.bf16.mxu0 0
      %1172 = vmatmul.mubr.bf16.gmra.mrb[0].mxu0 %v1083
      %v1173 = vpop.f32.mrb[0].mxu0
      %v1174 = vadd.f32 %v1079, %v1173
      %v1175 = vpop.f32.mrb[0].mxu0
      %v1176 = vadd.f32 %v1079, %v1175
      %v1177 = vpop.f32.mrb[0].mxu0
      %v1178 = vpop.f32.mrb[0].mxu0
      %1179 = vdwg.mxu0
      %vm1180 = vcmp.gt.f32.partialorder %v1133, 0.0
      %vm1181 = vcmp.gt.f32.partialorder %v1135, 0.0
      %vm1182 = vcmp.gt.f32.partialorder %v1174, 0.0
      %vm1183 = vcmp.gt.f32.partialorder %v1176, 0.0
      %v1184 = vmul.f32 %v1133, 0.125
      %v1185 = vmul.f32 %v1135, 0.125
      %v1186 = vmul.f32 %v1174, 0.125
      %v1187 = vmul.f32 %v1176, 0.125
      %v1188 = vsel %vm1180, %v1133, %v1184
      %v1189 = vsel %vm1181, %v1135, %v1185
      %v1190 = vsel %vm1182, %v1174, %v1186
      %v1191 = vsel %vm1183, %v1176, %v1187
      %v1192 = vsel %vm890, %v1188, 0.0
      %v1193 = vsel %vm891, %v1189, 0.0
      %v1194 = vsel %vm892, %v1190, 0.0
      %v1195 = vsel %vm893, %v1191, 0.0
      %v1200 = vcombine.low %v1192, %v1193
      %v1201 = vcombine.low %v1194, %v1195
      %1204 = vst [vmem:[%s376] sm:$0xff] %v1200
      %1205 = vst [vmem:[%s376 + $0x8] sm:$0xff] %v1201
      %p1206 = scmp.lt.s32.totalorder %s21, 1
      %s1207 = scalar_select %p1206, %s21, 1
      %s1208 = smul.addr %s1207, 4
      %s1209 = smul.addr %s1208, 4
      %s1210 = scalar_lea.vmem %s10, %s1209
      // Predicated region
      $region61: #{unet_up_forward.1} parent=59 // pred_check
        %p1211 = pneg %p259
      $region62: #{unet_up_forward.1} parent=59 // pred_check_branch
        %1213 = sbr.rel (%p1211) target = $region64
      $region63: #{unet_up_forward.1} parent=59 // pred_region
        _
      $region64: #{unet_up_forward.1} parent=59 // pred_fallthru
        _
    $region60: #{unet_up_forward.1} parent=5 // pred_fallthru
      _
    %p1214 = scmp.le.s32.totalorder 2, %s16
    // Predicated region
    $region65: #{unet_up_forward.1} parent=5 // pred_check
      %p1215 = pneg %p1214
    $region66: #{unet_up_forward.1} parent=5 // pred_check_branch
      %1217 = sbr.rel (%p1215) target = $region68
    $region67: #{unet_up_forward.1} parent=5 // pred_region
      %s1218 = ssub.s32 %s16, 2
      // Predicated region
      $region69: #{unet_up_forward.1} parent=67 // pred_check
        %p1219 = pneg %p265
      $region70: #{unet_up_forward.1} parent=67 // pred_check_branch
        %1221 = sbr.rel (%p1219) target = $region72
      $region71: #{unet_up_forward.1} parent=67 // pred_region
        %p1222 = scmp.lt.s32.totalorder %s22, 1
        %s1223 = scalar_select %p1222, %s22, 1
        %s1224 = smul.addr %s1223, 4
        %s1225 = smul.addr %s1224, 4
        %s1226 = scalar_lea.vmem %s10, %s1225
      $region72: #{unet_up_forward.1} parent=67 // pred_fallthru
        _
    $region68: #{unet_up_forward.1} parent=5 // pred_fallthru
      _
  $region6: #{unet_up_forward.1} parent=0 // loop_footer
    %s20 = sadd.s32 1, %s16
  $region7: #{unet_up_forward.1} parent=0 // loop_footer_branch
    %15 = sbr.rel target = $region3
  $region8: #{unet_up_forward.1} parent=0 // loop_exit
    _

</llo_original>
